<compile_context>
chip_gen: v7x
topology: tpu7x:2x2x1
jax: 0.10.0
libtpu: 0.0.40
codegen_flags: <defaults>
</compile_context>

<pallas_src>
import functools

import jax
import jax.numpy as jnp
from jax import lax
from jax.experimental import pallas as pl
from jax.experimental.pallas import tpu as pltpu


def _round_up(x, m):
    return ((x + m - 1) // m) * m


_TRANS_B = (((1,), (1,)), ((), ()))   # A @ B^T
_NN = (((1,), (0,)), ((), ()))        # A @ B


def _softmax_sublanes(x):
    """Softmax over axis 0 (sublanes); EUP reciprocal + one Newton step."""
    m = jnp.max(x, axis=0, keepdims=True)
    e = jnp.exp(x - m)
    s = jnp.sum(e, axis=0, keepdims=True)
    r = pl.reciprocal(s, approx=True)
    r = r * (2.0 - s * r)             # Newton step: recovers full f32 accuracy
    return e * r


def aie_kernel(u_ref, i_ref, m_user_ref, m_item_ref, sel_u_ref, sel_i_ref,
               uo_ref, io_ref, *, A, P1, P2):
    # u_ref / i_ref   : (TB, A*H1)           batch tile, batch on sublanes (HBM layout)
    # m_user / m_item : (A*P1 + A*P2, A*H1)  stacked block-diagonal weights
    # sel_u / sel_i   : (A, A*P2)            per-aspect w_hu / w_hi selection rows
    # uo_ref / io_ref : (A, TB)              lane-dense output blocks
    u = u_ref[...]
    it = i_ref[...]

    # Two stacked MXU matmuls produce every per-aspect projection with the
    # batch on the lane axis (the MXU does the transpose for us):
    #   proj_u rows [a*P1 : a*P1+H1]          = (u_a @ W_a)^T
    #   proj_u rows [A*P1 + a*P2 : ... + H2]  = W_u @ u_a^T
    #   proj_i rows [c*P1 : c*P1+H1]          = it_c^T
    #   proj_i rows [A*P1 + c*P2 : ... + H2]  = W_i @ it_c^T
    # (padded rows of each block are exact zeros)
    proj_u = lax.dot_general(m_user_ref[...], u, _TRANS_B,
                             preferred_element_type=jnp.float32)   # (A*(P1+P2), TB)
    proj_i = lax.dot_general(m_item_ref[...], it, _TRANS_B,
                             preferred_element_type=jnp.float32)

    off = A * P1
    uWa = [proj_u[a * P1:(a + 1) * P1] for a in range(A)]                 # (P1, TB)
    itT = [proj_i[c * P1:(c + 1) * P1] for c in range(A)]                 # (P1, TB)
    uWu = [proj_u[off + a * P2:off + (a + 1) * P2] for a in range(A)]     # (P2, TB)
    iWi = [proj_i[off + c * P2:off + (c + 1) * P2] for c in range(A)]     # (P2, TB)
    uWu_full = proj_u[off:]                                               # (A*P2, TB)
    iWi_full = proj_i[off:]

    # Affinity entries: aff[a][c] = relu( sum_h (u_a W_a)[h] * it_c[h] ), per lane.
    # Sublane-axis reduce over P1 rows (padding rows are zero in both factors).
    aff = [[jnp.maximum(jnp.sum(uWa[a] * itT[c], axis=0, keepdims=True), 0.0)
            for c in range(A)]
           for a in range(A)]

    # H_u = relu(W_u u^T + (W_i it^T) aff^T), assembled aspect-block-wise.
    cross_u = []
    for a in range(A):
        acc = aff[a][0] * iWi[0]
        for c in range(1, A):
            acc = acc + aff[a][c] * iWi[c]
        cross_u.append(acc)
    h_u = jnp.maximum(uWu_full + jnp.concatenate(cross_u, axis=0), 0.0)   # (A*P2, TB)

    # H_i = relu(W_i it^T + (W_u u^T) aff)
    cross_i = []
    for c in range(A):
        acc = aff[0][c] * uWu[0]
        for a in range(1, A):
            acc = acc + aff[a][c] * uWu[a]
        cross_i.append(acc)
    h_i = jnp.maximum(iWi_full + jnp.concatenate(cross_i, axis=0), 0.0)

    # Per-aspect importance logits via one small MXU matmul each (K = A*P2).
    logits_u = lax.dot_general(sel_u_ref[...], h_u, _NN,
                               preferred_element_type=jnp.float32)        # (A, TB)
    logits_i = lax.dot_general(sel_i_ref[...], h_i, _NN,
                               preferred_element_type=jnp.float32)

    uo_ref[...] = _softmax_sublanes(logits_u)
    io_ref[...] = _softmax_sublanes(logits_i)


def aie_forward(user_asp, item_asp, W_a, W_u, w_hu, W_i, w_hi, *, tb=512):
    B, A, H1 = user_asp.shape
    H2 = W_u.shape[0]
    F = A * H1
    P1 = _round_up(H1, 8)   # per-aspect row block for H1-sized projections (16)
    P2 = _round_up(H2, 8)   # per-aspect row block for H2-sized projections (56)
    f32 = jnp.float32

    # Free reshape (collapse of contiguous trailing dims) -- no transpose, no copy.
    u_flat = user_asp.astype(f32).reshape(B, F)
    i_flat = item_asp.astype(f32).reshape(B, F)

    # Batch tile: multiple of 128 (it becomes the lane axis inside the kernel).
    TB = min(tb, _round_up(B, 128))
    B_pad = _round_up(B, TB)
    if B_pad != B:
        u_flat = jnp.pad(u_flat, ((0, B_pad - B), (0, 0)))
        i_flat = jnp.pad(i_flat, ((0, B_pad - B), (0, 0)))

    # Tiny stacked block-diagonal weights (~0.2 MiB total, built once per call).
    eyeA = jnp.eye(A, dtype=f32)
    wa_t = jnp.pad(W_a.astype(f32).T, ((0, P1 - H1), (0, 0)))            # (P1, H1)
    i_h1 = jnp.pad(jnp.eye(H1, dtype=f32), ((0, P1 - H1), (0, 0)))       # (P1, H1)
    wu_p = jnp.pad(W_u.astype(f32), ((0, P2 - H2), (0, 0)))              # (P2, H1)
    wi_p = jnp.pad(W_i.astype(f32), ((0, P2 - H2), (0, 0)))              # (P2, H1)
    m_user = jnp.concatenate([jnp.kron(eyeA, wa_t), jnp.kron(eyeA, wu_p)], axis=0)
    m_item = jnp.concatenate([jnp.kron(eyeA, i_h1), jnp.kron(eyeA, wi_p)], axis=0)
    whu_p = jnp.pad(w_hu.astype(f32), ((0, P2 - H2), (0, 0)))            # (P2, 1)
    whi_p = jnp.pad(w_hi.astype(f32), ((0, P2 - H2), (0, 0)))
    sel_u = jnp.kron(eyeA, whu_p.T)                                       # (A, A*P2)
    sel_i = jnp.kron(eyeA, whi_p.T)

    MU = m_user.shape[0]     # A*(P1+P2)
    AH2 = A * P2

    kernel = functools.partial(aie_kernel, A=A, P1=P1, P2=P2)
    uo, io = pl.pallas_call(
        kernel,
        out_shape=(jax.ShapeDtypeStruct((A, B_pad), f32),
                   jax.ShapeDtypeStruct((A, B_pad), f32)),
        grid_spec=pltpu.PrefetchScalarGridSpec(
            num_scalar_prefetch=0,
            grid=(B_pad // TB,),
            in_specs=[
                pl.BlockSpec((TB, F), lambda b: (b, 0)),     # user batch tile
                pl.BlockSpec((TB, F), lambda b: (b, 0)),     # item batch tile
                pl.BlockSpec((MU, F), lambda b: (0, 0)),     # stacked user weights
                pl.BlockSpec((MU, F), lambda b: (0, 0)),     # stacked item weights
                pl.BlockSpec((A, AH2), lambda b: (0, 0)),    # w_hu selection rows
                pl.BlockSpec((A, AH2), lambda b: (0, 0)),    # w_hi selection rows
            ],
            out_specs=[
                pl.BlockSpec((A, TB), lambda b: (0, b)),     # lane-dense stores
                pl.BlockSpec((A, TB), lambda b: (0, b)),
            ],
        ),
        compiler_params=pltpu.CompilerParams(
            dimension_semantics=("parallel",),
            vmem_limit_bytes=32 * 1024 * 1024),
    )(u_flat, i_flat, m_user, m_item, sel_u, sel_i)

    # Tiny (A, B) -> (B, A) transpose in the wrapper (a few KiB).
    return uo.T[:B], io.T[:B]


def aie_reference(user_asp, item_asp, W_a, W_u, w_hu, W_i, w_hi):
    """Pure-JAX port of the PyTorch forward (for verification)."""
    prec = lax.Precision.HIGHEST
    uT = jnp.swapaxes(user_asp, 1, 2)
    iT = jnp.swapaxes(item_asp, 1, 2)
    aff = jax.nn.relu(jnp.matmul(jnp.matmul(user_asp, W_a, precision=prec),
                                 iT, precision=prec))
    H_u = jax.nn.relu(
        jnp.matmul(W_u, uT, precision=prec)
        + jnp.matmul(jnp.matmul(W_i, iT, precision=prec),
                     jnp.swapaxes(aff, 1, 2), precision=prec))
    u_imp = jax.nn.softmax(
        jnp.swapaxes(jnp.matmul(w_hu.T, H_u, precision=prec), 1, 2), axis=1)[:, :, 0]
    H_i = jax.nn.relu(
        jnp.matmul(W_i, iT, precision=prec)
        + jnp.matmul(jnp.matmul(W_u, uT, precision=prec), aff, precision=prec))
    i_imp = jax.nn.softmax(
        jnp.swapaxes(jnp.matmul(w_hi.T, H_i, precision=prec), 1, 2), axis=1)[:, :, 0]
    return u_imp, i_imp


if __name__ == "__main__":
    key = jax.random.PRNGKey(0)
    (k_u, k_i, k_wa, k_wu, k_whu, k_wi, k_whi, k_u2, k_i2) = jax.random.split(key, 9)

    A, H1, H2 = 5, 10, 50   # num_aspects, h1, hidden (module fixes H1=10, H2=50)

    # Deterministic parameter init, matching torch uniform_(-0.01, 0.01) shapes.
    W_a = jax.random.uniform(k_wa, (H1, H1), jnp.float32, -0.01, 0.01)
    W_u = jax.random.uniform(k_wu, (H2, H1), jnp.float32, -0.01, 0.01)
    w_hu = jax.random.uniform(k_whu, (H2, 1), jnp.float32, -0.01, 0.01)
    W_i = jax.random.uniform(k_wi, (H2, H1), jnp.float32, -0.01, 0.01)
    w_hi = jax.random.uniform(k_whi, (H2, 1), jnp.float32, -0.01, 0.01)

    # --- Small spec-sized check (bsz = 2) ---
    B = 2
    user_asp = jax.random.normal(k_u, (B, A, H1), dtype=jnp.float32)
    item_asp = jax.random.normal(k_i, (B, A, H1), dtype=jnp.float32)

    u_imp, i_imp = aie_forward(user_asp, item_asp, W_a, W_u, w_hu, W_i, w_hi)
    jax.block_until_ready((u_imp, i_imp))

    u_exp, i_exp = aie_reference(user_asp, item_asp, W_a, W_u, w_hu, W_i, w_hi)
    assert u_imp.shape == (B, A) and i_imp.shape == (B, A)
    assert jnp.allclose(u_imp, u_exp, atol=5e-5, rtol=5e-5)
    assert jnp.allclose(i_imp, i_exp, atol=5e-5, rtol=5e-5)

    # --- Larger batch exercising the batched grid (TB=512 -> 2 parallel steps) ---
    B2 = 1024
    user2 = jax.random.normal(k_u2, (B2, A, H1), dtype=jnp.float32)
    item2 = jax.random.normal(k_i2, (B2, A, H1), dtype=jnp.float32)

    u2, i2 = aie_forward(user2, item2, W_a, W_u, w_hu, W_i, w_hi)
    jax.block_until_ready((u2, i2))

    u2_exp, i2_exp = aie_reference(user2, item2, W_a, W_u, w_hu, W_i, w_hi)
    assert u2.shape == (B2, A) and i2.shape == (B2, A)
    assert jnp.allclose(u2, u2_exp, atol=5e-5, rtol=5e-5)
    assert jnp.allclose(i2, i2_exp, atol=5e-5, rtol=5e-5)

    print("KERNEL_OK")
</pallas_src>

<mosaic_0001>
module attributes {stable_mosaic.version = 11 : i64} {
  func.func @aie_kernel(%arg0: i32, %arg1: memref<128x50xf32, #tpu.memory_space<vmem>>, %arg2: memref<128x50xf32, #tpu.memory_space<vmem>>, %arg3: memref<360x50xf32, #tpu.memory_space<vmem>>, %arg4: memref<360x50xf32, #tpu.memory_space<vmem>>, %arg5: memref<5x280xf32, #tpu.memory_space<vmem>>, %arg6: memref<5x280xf32, #tpu.memory_space<vmem>>, %arg7: memref<5x128xf32, #tpu.memory_space<vmem>>, %arg8: memref<5x128xf32, #tpu.memory_space<vmem>>) attributes {dimension_semantics = [#tpu.dimension_semantics<parallel>], iteration_bounds = array<i64: 1>, scalar_prefetch = 0 : i64, scratch_operands = 0 : i64, tpu.core_type = #tpu.core_type<tc>, window_params = [{transform_indices = @transform_0, window_bounds = array<i64: 128, 50>}, {transform_indices = @transform_1, window_bounds = array<i64: 128, 50>}, {pipeline_mode = #tpu.pipeline_mode<synchronous>, transform_indices = @transform_2, window_bounds = array<i64: 360, 50>}, {pipeline_mode = #tpu.pipeline_mode<synchronous>, transform_indices = @transform_3, window_bounds = array<i64: 360, 50>}, {pipeline_mode = #tpu.pipeline_mode<synchronous>, transform_indices = @transform_4, window_bounds = array<i64: 5, 280>}, {pipeline_mode = #tpu.pipeline_mode<synchronous>, transform_indices = @transform_5, window_bounds = array<i64: 5, 280>}, {transform_indices = @transform_6, window_bounds = array<i64: 5, 128>}, {transform_indices = @transform_7, window_bounds = array<i64: 5, 128>}]} {
    %c0 = arith.constant 0 : index
    %c0_0 = arith.constant 0 : index
    %0 = vector.load %arg1[%c0, %c0_0] : memref<128x50xf32, #tpu.memory_space<vmem>>, vector<128x50xf32>
    %c0_1 = arith.constant 0 : index
    %c0_2 = arith.constant 0 : index
    %1 = vector.load %arg2[%c0_1, %c0_2] : memref<128x50xf32, #tpu.memory_space<vmem>>, vector<128x50xf32>
    %c0_3 = arith.constant 0 : index
    %c0_4 = arith.constant 0 : index
    %2 = vector.load %arg3[%c0_3, %c0_4] : memref<360x50xf32, #tpu.memory_space<vmem>>, vector<360x50xf32>
    %cst = arith.constant dense<0.000000e+00> : vector<360x128xf32>
    %3 = tpu.matmul %2, %0, %cst {dimension_numbers = #tpu.dot_dimension_numbers<[1], [1], [0], [0], [0, 0, 1, 0], [], []>} : vector<360x50xf32>, vector<128x50xf32>, vector<360x128xf32> -> vector<360x128xf32>
    %c0_5 = arith.constant 0 : index
    %c0_6 = arith.constant 0 : index
    %4 = vector.load %arg4[%c0_5, %c0_6] : memref<360x50xf32, #tpu.memory_space<vmem>>, vector<360x50xf32>
    %cst_7 = arith.constant dense<0.000000e+00> : vector<360x128xf32>
    %5 = tpu.matmul %4, %1, %cst_7 {dimension_numbers = #tpu.dot_dimension_numbers<[1], [1], [0], [0], [0, 0, 1, 0], [], []>} : vector<360x50xf32>, vector<128x50xf32>, vector<360x128xf32> -> vector<360x128xf32>
    %6 = vector.extract_strided_slice %3 {offsets = [0, 0], sizes = [16, 128], strides = [1, 1]} : vector<360x128xf32> to vector<16x128xf32>
    %7 = vector.extract_strided_slice %3 {offsets = [16, 0], sizes = [16, 128], strides = [1, 1]} : vector<360x128xf32> to vector<16x128xf32>
    %8 = vector.extract_strided_slice %3 {offsets = [32, 0], sizes = [16, 128], strides = [1, 1]} : vector<360x128xf32> to vector<16x128xf32>
    %9 = vector.extract_strided_slice %3 {offsets = [48, 0], sizes = [16, 128], strides = [1, 1]} : vector<360x128xf32> to vector<16x128xf32>
    %10 = vector.extract_strided_slice %3 {offsets = [64, 0], sizes = [16, 128], strides = [1, 1]} : vector<360x128xf32> to vector<16x128xf32>
    %11 = vector.extract_strided_slice %5 {offsets = [0, 0], sizes = [16, 128], strides = [1, 1]} : vector<360x128xf32> to vector<16x128xf32>
    %12 = vector.extract_strided_slice %5 {offsets = [16, 0], sizes = [16, 128], strides = [1, 1]} : vector<360x128xf32> to vector<16x128xf32>
    %13 = vector.extract_strided_slice %5 {offsets = [32, 0], sizes = [16, 128], strides = [1, 1]} : vector<360x128xf32> to vector<16x128xf32>
    %14 = vector.extract_strided_slice %5 {offsets = [48, 0], sizes = [16, 128], strides = [1, 1]} : vector<360x128xf32> to vector<16x128xf32>
    %15 = vector.extract_strided_slice %5 {offsets = [64, 0], sizes = [16, 128], strides = [1, 1]} : vector<360x128xf32> to vector<16x128xf32>
    %16 = vector.extract_strided_slice %3 {offsets = [80, 0], sizes = [56, 128], strides = [1, 1]} : vector<360x128xf32> to vector<56x128xf32>
    %17 = vector.extract_strided_slice %3 {offsets = [136, 0], sizes = [56, 128], strides = [1, 1]} : vector<360x128xf32> to vector<56x128xf32>
    %18 = vector.extract_strided_slice %3 {offsets = [192, 0], sizes = [56, 128], strides = [1, 1]} : vector<360x128xf32> to vector<56x128xf32>
    %19 = vector.extract_strided_slice %3 {offsets = [248, 0], sizes = [56, 128], strides = [1, 1]} : vector<360x128xf32> to vector<56x128xf32>
    %20 = vector.extract_strided_slice %3 {offsets = [304, 0], sizes = [56, 128], strides = [1, 1]} : vector<360x128xf32> to vector<56x128xf32>
    %21 = vector.extract_strided_slice %5 {offsets = [80, 0], sizes = [56, 128], strides = [1, 1]} : vector<360x128xf32> to vector<56x128xf32>
    %22 = vector.extract_strided_slice %5 {offsets = [136, 0], sizes = [56, 128], strides = [1, 1]} : vector<360x128xf32> to vector<56x128xf32>
    %23 = vector.extract_strided_slice %5 {offsets = [192, 0], sizes = [56, 128], strides = [1, 1]} : vector<360x128xf32> to vector<56x128xf32>
    %24 = vector.extract_strided_slice %5 {offsets = [248, 0], sizes = [56, 128], strides = [1, 1]} : vector<360x128xf32> to vector<56x128xf32>
    %25 = vector.extract_strided_slice %5 {offsets = [304, 0], sizes = [56, 128], strides = [1, 1]} : vector<360x128xf32> to vector<56x128xf32>
    %26 = vector.extract_strided_slice %3 {offsets = [80, 0], sizes = [280, 128], strides = [1, 1]} : vector<360x128xf32> to vector<280x128xf32>
    %27 = vector.extract_strided_slice %5 {offsets = [80, 0], sizes = [280, 128], strides = [1, 1]} : vector<360x128xf32> to vector<280x128xf32>
    %28 = arith.mulf %6, %11 : vector<16x128xf32>
    %cst_8 = arith.constant dense<0.000000e+00> : vector<128xf32>
    %29 = vector.multi_reduction <add>, %28, %cst_8 [0] : vector<16x128xf32> to vector<128xf32>
    %30 = vector.shape_cast %29 : vector<128xf32> to vector<1x128xf32>
    %cst_9 = arith.constant 0.000000e+00 : f32
    %31 = vector.broadcast %cst_9 : f32 to vector<1x128xf32>
    %32 = arith.maximumf %30, %31 : vector<1x128xf32>
    %33 = arith.mulf %6, %12 : vector<16x128xf32>
    %cst_10 = arith.constant dense<0.000000e+00> : vector<128xf32>
    %34 = vector.multi_reduction <add>, %33, %cst_10 [0] : vector<16x128xf32> to vector<128xf32>
    %35 = vector.shape_cast %34 : vector<128xf32> to vector<1x128xf32>
    %cst_11 = arith.constant 0.000000e+00 : f32
    %36 = vector.broadcast %cst_11 : f32 to vector<1x128xf32>
    %37 = arith.maximumf %35, %36 : vector<1x128xf32>
    %38 = arith.mulf %6, %13 : vector<16x128xf32>
    %cst_12 = arith.constant dense<0.000000e+00> : vector<128xf32>
    %39 = vector.multi_reduction <add>, %38, %cst_12 [0] : vector<16x128xf32> to vector<128xf32>
    %40 = vector.shape_cast %39 : vector<128xf32> to vector<1x128xf32>
    %cst_13 = arith.constant 0.000000e+00 : f32
    %41 = vector.broadcast %cst_13 : f32 to vector<1x128xf32>
    %42 = arith.maximumf %40, %41 : vector<1x128xf32>
    %43 = arith.mulf %6, %14 : vector<16x128xf32>
    %cst_14 = arith.constant dense<0.000000e+00> : vector<128xf32>
    %44 = vector.multi_reduction <add>, %43, %cst_14 [0] : vector<16x128xf32> to vector<128xf32>
    %45 = vector.shape_cast %44 : vector<128xf32> to vector<1x128xf32>
    %cst_15 = arith.constant 0.000000e+00 : f32
    %46 = vector.broadcast %cst_15 : f32 to vector<1x128xf32>
    %47 = arith.maximumf %45, %46 : vector<1x128xf32>
    %48 = arith.mulf %6, %15 : vector<16x128xf32>
    %cst_16 = arith.constant dense<0.000000e+00> : vector<128xf32>
    %49 = vector.multi_reduction <add>, %48, %cst_16 [0] : vector<16x128xf32> to vector<128xf32>
    %50 = vector.shape_cast %49 : vector<128xf32> to vector<1x128xf32>
    %cst_17 = arith.constant 0.000000e+00 : f32
    %51 = vector.broadcast %cst_17 : f32 to vector<1x128xf32>
    %52 = arith.maximumf %50, %51 : vector<1x128xf32>
    %53 = arith.mulf %7, %11 : vector<16x128xf32>
    %cst_18 = arith.constant dense<0.000000e+00> : vector<128xf32>
    %54 = vector.multi_reduction <add>, %53, %cst_18 [0] : vector<16x128xf32> to vector<128xf32>
    %55 = vector.shape_cast %54 : vector<128xf32> to vector<1x128xf32>
    %cst_19 = arith.constant 0.000000e+00 : f32
    %56 = vector.broadcast %cst_19 : f32 to vector<1x128xf32>
    %57 = arith.maximumf %55, %56 : vector<1x128xf32>
    %58 = arith.mulf %7, %12 : vector<16x128xf32>
    %cst_20 = arith.constant dense<0.000000e+00> : vector<128xf32>
    %59 = vector.multi_reduction <add>, %58, %cst_20 [0] : vector<16x128xf32> to vector<128xf32>
    %60 = vector.shape_cast %59 : vector<128xf32> to vector<1x128xf32>
    %cst_21 = arith.constant 0.000000e+00 : f32
    %61 = vector.broadcast %cst_21 : f32 to vector<1x128xf32>
    %62 = arith.maximumf %60, %61 : vector<1x128xf32>
    %63 = arith.mulf %7, %13 : vector<16x128xf32>
    %cst_22 = arith.constant dense<0.000000e+00> : vector<128xf32>
    %64 = vector.multi_reduction <add>, %63, %cst_22 [0] : vector<16x128xf32> to vector<128xf32>
    %65 = vector.shape_cast %64 : vector<128xf32> to vector<1x128xf32>
    %cst_23 = arith.constant 0.000000e+00 : f32
    %66 = vector.broadcast %cst_23 : f32 to vector<1x128xf32>
    %67 = arith.maximumf %65, %66 : vector<1x128xf32>
    %68 = arith.mulf %7, %14 : vector<16x128xf32>
    %cst_24 = arith.constant dense<0.000000e+00> : vector<128xf32>
    %69 = vector.multi_reduction <add>, %68, %cst_24 [0] : vector<16x128xf32> to vector<128xf32>
    %70 = vector.shape_cast %69 : vector<128xf32> to vector<1x128xf32>
    %cst_25 = arith.constant 0.000000e+00 : f32
    %71 = vector.broadcast %cst_25 : f32 to vector<1x128xf32>
    %72 = arith.maximumf %70, %71 : vector<1x128xf32>
    %73 = arith.mulf %7, %15 : vector<16x128xf32>
    %cst_26 = arith.constant dense<0.000000e+00> : vector<128xf32>
    %74 = vector.multi_reduction <add>, %73, %cst_26 [0] : vector<16x128xf32> to vector<128xf32>
    %75 = vector.shape_cast %74 : vector<128xf32> to vector<1x128xf32>
    %cst_27 = arith.constant 0.000000e+00 : f32
    %76 = vector.broadcast %cst_27 : f32 to vector<1x128xf32>
    %77 = arith.maximumf %75, %76 : vector<1x128xf32>
    %78 = arith.mulf %8, %11 : vector<16x128xf32>
    %cst_28 = arith.constant dense<0.000000e+00> : vector<128xf32>
    %79 = vector.multi_reduction <add>, %78, %cst_28 [0] : vector<16x128xf32> to vector<128xf32>
    %80 = vector.shape_cast %79 : vector<128xf32> to vector<1x128xf32>
    %cst_29 = arith.constant 0.000000e+00 : f32
    %81 = vector.broadcast %cst_29 : f32 to vector<1x128xf32>
    %82 = arith.maximumf %80, %81 : vector<1x128xf32>
    %83 = arith.mulf %8, %12 : vector<16x128xf32>
    %cst_30 = arith.constant dense<0.000000e+00> : vector<128xf32>
    %84 = vector.multi_reduction <add>, %83, %cst_30 [0] : vector<16x128xf32> to vector<128xf32>
    %85 = vector.shape_cast %84 : vector<128xf32> to vector<1x128xf32>
    %cst_31 = arith.constant 0.000000e+00 : f32
    %86 = vector.broadcast %cst_31 : f32 to vector<1x128xf32>
    %87 = arith.maximumf %85, %86 : vector<1x128xf32>
    %88 = arith.mulf %8, %13 : vector<16x128xf32>
    %cst_32 = arith.constant dense<0.000000e+00> : vector<128xf32>
    %89 = vector.multi_reduction <add>, %88, %cst_32 [0] : vector<16x128xf32> to vector<128xf32>
    %90 = vector.shape_cast %89 : vector<128xf32> to vector<1x128xf32>
    %cst_33 = arith.constant 0.000000e+00 : f32
    %91 = vector.broadcast %cst_33 : f32 to vector<1x128xf32>
    %92 = arith.maximumf %90, %91 : vector<1x128xf32>
    %93 = arith.mulf %8, %14 : vector<16x128xf32>
    %cst_34 = arith.constant dense<0.000000e+00> : vector<128xf32>
    %94 = vector.multi_reduction <add>, %93, %cst_34 [0] : vector<16x128xf32> to vector<128xf32>
    %95 = vector.shape_cast %94 : vector<128xf32> to vector<1x128xf32>
    %cst_35 = arith.constant 0.000000e+00 : f32
    %96 = vector.broadcast %cst_35 : f32 to vector<1x128xf32>
    %97 = arith.maximumf %95, %96 : vector<1x128xf32>
    %98 = arith.mulf %8, %15 : vector<16x128xf32>
    %cst_36 = arith.constant dense<0.000000e+00> : vector<128xf32>
    %99 = vector.multi_reduction <add>, %98, %cst_36 [0] : vector<16x128xf32> to vector<128xf32>
    %100 = vector.shape_cast %99 : vector<128xf32> to vector<1x128xf32>
    %cst_37 = arith.constant 0.000000e+00 : f32
    %101 = vector.broadcast %cst_37 : f32 to vector<1x128xf32>
    %102 = arith.maximumf %100, %101 : vector<1x128xf32>
    %103 = arith.mulf %9, %11 : vector<16x128xf32>
    %cst_38 = arith.constant dense<0.000000e+00> : vector<128xf32>
    %104 = vector.multi_reduction <add>, %103, %cst_38 [0] : vector<16x128xf32> to vector<128xf32>
    %105 = vector.shape_cast %104 : vector<128xf32> to vector<1x128xf32>
    %cst_39 = arith.constant 0.000000e+00 : f32
    %106 = vector.broadcast %cst_39 : f32 to vector<1x128xf32>
    %107 = arith.maximumf %105, %106 : vector<1x128xf32>
    %108 = arith.mulf %9, %12 : vector<16x128xf32>
    %cst_40 = arith.constant dense<0.000000e+00> : vector<128xf32>
    %109 = vector.multi_reduction <add>, %108, %cst_40 [0] : vector<16x128xf32> to vector<128xf32>
    %110 = vector.shape_cast %109 : vector<128xf32> to vector<1x128xf32>
    %cst_41 = arith.constant 0.000000e+00 : f32
    %111 = vector.broadcast %cst_41 : f32 to vector<1x128xf32>
    %112 = arith.maximumf %110, %111 : vector<1x128xf32>
    %113 = arith.mulf %9, %13 : vector<16x128xf32>
    %cst_42 = arith.constant dense<0.000000e+00> : vector<128xf32>
    %114 = vector.multi_reduction <add>, %113, %cst_42 [0] : vector<16x128xf32> to vector<128xf32>
    %115 = vector.shape_cast %114 : vector<128xf32> to vector<1x128xf32>
    %cst_43 = arith.constant 0.000000e+00 : f32
    %116 = vector.broadcast %cst_43 : f32 to vector<1x128xf32>
    %117 = arith.maximumf %115, %116 : vector<1x128xf32>
    %118 = arith.mulf %9, %14 : vector<16x128xf32>
    %cst_44 = arith.constant dense<0.000000e+00> : vector<128xf32>
    %119 = vector.multi_reduction <add>, %118, %cst_44 [0] : vector<16x128xf32> to vector<128xf32>
    %120 = vector.shape_cast %119 : vector<128xf32> to vector<1x128xf32>
    %cst_45 = arith.constant 0.000000e+00 : f32
    %121 = vector.broadcast %cst_45 : f32 to vector<1x128xf32>
    %122 = arith.maximumf %120, %121 : vector<1x128xf32>
    %123 = arith.mulf %9, %15 : vector<16x128xf32>
    %cst_46 = arith.constant dense<0.000000e+00> : vector<128xf32>
    %124 = vector.multi_reduction <add>, %123, %cst_46 [0] : vector<16x128xf32> to vector<128xf32>
    %125 = vector.shape_cast %124 : vector<128xf32> to vector<1x128xf32>
    %cst_47 = arith.constant 0.000000e+00 : f32
    %126 = vector.broadcast %cst_47 : f32 to vector<1x128xf32>
    %127 = arith.maximumf %125, %126 : vector<1x128xf32>
    %128 = arith.mulf %10, %11 : vector<16x128xf32>
    %cst_48 = arith.constant dense<0.000000e+00> : vector<128xf32>
    %129 = vector.multi_reduction <add>, %128, %cst_48 [0] : vector<16x128xf32> to vector<128xf32>
    %130 = vector.shape_cast %129 : vector<128xf32> to vector<1x128xf32>
    %cst_49 = arith.constant 0.000000e+00 : f32
    %131 = vector.broadcast %cst_49 : f32 to vector<1x128xf32>
    %132 = arith.maximumf %130, %131 : vector<1x128xf32>
    %133 = arith.mulf %10, %12 : vector<16x128xf32>
    %cst_50 = arith.constant dense<0.000000e+00> : vector<128xf32>
    %134 = vector.multi_reduction <add>, %133, %cst_50 [0] : vector<16x128xf32> to vector<128xf32>
    %135 = vector.shape_cast %134 : vector<128xf32> to vector<1x128xf32>
    %cst_51 = arith.constant 0.000000e+00 : f32
    %136 = vector.broadcast %cst_51 : f32 to vector<1x128xf32>
    %137 = arith.maximumf %135, %136 : vector<1x128xf32>
    %138 = arith.mulf %10, %13 : vector<16x128xf32>
    %cst_52 = arith.constant dense<0.000000e+00> : vector<128xf32>
    %139 = vector.multi_reduction <add>, %138, %cst_52 [0] : vector<16x128xf32> to vector<128xf32>
    %140 = vector.shape_cast %139 : vector<128xf32> to vector<1x128xf32>
    %cst_53 = arith.constant 0.000000e+00 : f32
    %141 = vector.broadcast %cst_53 : f32 to vector<1x128xf32>
    %142 = arith.maximumf %140, %141 : vector<1x128xf32>
    %143 = arith.mulf %10, %14 : vector<16x128xf32>
    %cst_54 = arith.constant dense<0.000000e+00> : vector<128xf32>
    %144 = vector.multi_reduction <add>, %143, %cst_54 [0] : vector<16x128xf32> to vector<128xf32>
    %145 = vector.shape_cast %144 : vector<128xf32> to vector<1x128xf32>
    %cst_55 = arith.constant 0.000000e+00 : f32
    %146 = vector.broadcast %cst_55 : f32 to vector<1x128xf32>
    %147 = arith.maximumf %145, %146 : vector<1x128xf32>
    %148 = arith.mulf %10, %15 : vector<16x128xf32>
    %cst_56 = arith.constant dense<0.000000e+00> : vector<128xf32>
    %149 = vector.multi_reduction <add>, %148, %cst_56 [0] : vector<16x128xf32> to vector<128xf32>
    %150 = vector.shape_cast %149 : vector<128xf32> to vector<1x128xf32>
    %cst_57 = arith.constant 0.000000e+00 : f32
    %151 = vector.broadcast %cst_57 : f32 to vector<1x128xf32>
    %152 = arith.maximumf %150, %151 : vector<1x128xf32>
    %153 = vector.broadcast %32 : vector<1x128xf32> to vector<56x128xf32>
    %154 = arith.mulf %153, %21 : vector<56x128xf32>
    %155 = vector.broadcast %37 : vector<1x128xf32> to vector<56x128xf32>
    %156 = arith.mulf %155, %22 : vector<56x128xf32>
    %157 = arith.addf %154, %156 : vector<56x128xf32>
    %158 = vector.broadcast %42 : vector<1x128xf32> to vector<56x128xf32>
    %159 = arith.mulf %158, %23 : vector<56x128xf32>
    %160 = arith.addf %157, %159 : vector<56x128xf32>
    %161 = vector.broadcast %47 : vector<1x128xf32> to vector<56x128xf32>
    %162 = arith.mulf %161, %24 : vector<56x128xf32>
    %163 = arith.addf %160, %162 : vector<56x128xf32>
    %164 = vector.broadcast %52 : vector<1x128xf32> to vector<56x128xf32>
    %165 = arith.mulf %164, %25 : vector<56x128xf32>
    %166 = arith.addf %163, %165 : vector<56x128xf32>
    %167 = vector.broadcast %57 : vector<1x128xf32> to vector<56x128xf32>
    %168 = arith.mulf %167, %21 : vector<56x128xf32>
    %169 = vector.broadcast %62 : vector<1x128xf32> to vector<56x128xf32>
    %170 = arith.mulf %169, %22 : vector<56x128xf32>
    %171 = arith.addf %168, %170 : vector<56x128xf32>
    %172 = vector.broadcast %67 : vector<1x128xf32> to vector<56x128xf32>
    %173 = arith.mulf %172, %23 : vector<56x128xf32>
    %174 = arith.addf %171, %173 : vector<56x128xf32>
    %175 = vector.broadcast %72 : vector<1x128xf32> to vector<56x128xf32>
    %176 = arith.mulf %175, %24 : vector<56x128xf32>
    %177 = arith.addf %174, %176 : vector<56x128xf32>
    %178 = vector.broadcast %77 : vector<1x128xf32> to vector<56x128xf32>
    %179 = arith.mulf %178, %25 : vector<56x128xf32>
    %180 = arith.addf %177, %179 : vector<56x128xf32>
    %181 = vector.broadcast %82 : vector<1x128xf32> to vector<56x128xf32>
    %182 = arith.mulf %181, %21 : vector<56x128xf32>
    %183 = vector.broadcast %87 : vector<1x128xf32> to vector<56x128xf32>
    %184 = arith.mulf %183, %22 : vector<56x128xf32>
    %185 = arith.addf %182, %184 : vector<56x128xf32>
    %186 = vector.broadcast %92 : vector<1x128xf32> to vector<56x128xf32>
    %187 = arith.mulf %186, %23 : vector<56x128xf32>
    %188 = arith.addf %185, %187 : vector<56x128xf32>
    %189 = vector.broadcast %97 : vector<1x128xf32> to vector<56x128xf32>
    %190 = arith.mulf %189, %24 : vector<56x128xf32>
    %191 = arith.addf %188, %190 : vector<56x128xf32>
    %192 = vector.broadcast %102 : vector<1x128xf32> to vector<56x128xf32>
    %193 = arith.mulf %192, %25 : vector<56x128xf32>
    %194 = arith.addf %191, %193 : vector<56x128xf32>
    %195 = vector.broadcast %107 : vector<1x128xf32> to vector<56x128xf32>
    %196 = arith.mulf %195, %21 : vector<56x128xf32>
    %197 = vector.broadcast %112 : vector<1x128xf32> to vector<56x128xf32>
    %198 = arith.mulf %197, %22 : vector<56x128xf32>
    %199 = arith.addf %196, %198 : vector<56x128xf32>
    %200 = vector.broadcast %117 : vector<1x128xf32> to vector<56x128xf32>
    %201 = arith.mulf %200, %23 : vector<56x128xf32>
    %202 = arith.addf %199, %201 : vector<56x128xf32>
    %203 = vector.broadcast %122 : vector<1x128xf32> to vector<56x128xf32>
    %204 = arith.mulf %203, %24 : vector<56x128xf32>
    %205 = arith.addf %202, %204 : vector<56x128xf32>
    %206 = vector.broadcast %127 : vector<1x128xf32> to vector<56x128xf32>
    %207 = arith.mulf %206, %25 : vector<56x128xf32>
    %208 = arith.addf %205, %207 : vector<56x128xf32>
    %209 = vector.broadcast %132 : vector<1x128xf32> to vector<56x128xf32>
    %210 = arith.mulf %209, %21 : vector<56x128xf32>
    %211 = vector.broadcast %137 : vector<1x128xf32> to vector<56x128xf32>
    %212 = arith.mulf %211, %22 : vector<56x128xf32>
    %213 = arith.addf %210, %212 : vector<56x128xf32>
    %214 = vector.broadcast %142 : vector<1x128xf32> to vector<56x128xf32>
    %215 = arith.mulf %214, %23 : vector<56x128xf32>
    %216 = arith.addf %213, %215 : vector<56x128xf32>
    %217 = vector.broadcast %147 : vector<1x128xf32> to vector<56x128xf32>
    %218 = arith.mulf %217, %24 : vector<56x128xf32>
    %219 = arith.addf %216, %218 : vector<56x128xf32>
    %220 = vector.broadcast %152 : vector<1x128xf32> to vector<56x128xf32>
    %221 = arith.mulf %220, %25 : vector<56x128xf32>
    %222 = arith.addf %219, %221 : vector<56x128xf32>
    %223 = tpu.concatenate %166, %180, %194, %208, %222 in 0 : vector<56x128xf32>, vector<56x128xf32>, vector<56x128xf32>, vector<56x128xf32>, vector<56x128xf32> -> vector<280x128xf32>
    %224 = arith.addf %26, %223 : vector<280x128xf32>
    %cst_58 = arith.constant 0.000000e+00 : f32
    %225 = vector.broadcast %cst_58 : f32 to vector<280x128xf32>
    %226 = arith.maximumf %224, %225 : vector<280x128xf32>
    %227 = vector.broadcast %32 : vector<1x128xf32> to vector<56x128xf32>
    %228 = arith.mulf %227, %16 : vector<56x128xf32>
    %229 = vector.broadcast %57 : vector<1x128xf32> to vector<56x128xf32>
    %230 = arith.mulf %229, %17 : vector<56x128xf32>
    %231 = arith.addf %228, %230 : vector<56x128xf32>
    %232 = vector.broadcast %82 : vector<1x128xf32> to vector<56x128xf32>
    %233 = arith.mulf %232, %18 : vector<56x128xf32>
    %234 = arith.addf %231, %233 : vector<56x128xf32>
    %235 = vector.broadcast %107 : vector<1x128xf32> to vector<56x128xf32>
    %236 = arith.mulf %235, %19 : vector<56x128xf32>
    %237 = arith.addf %234, %236 : vector<56x128xf32>
    %238 = vector.broadcast %132 : vector<1x128xf32> to vector<56x128xf32>
    %239 = arith.mulf %238, %20 : vector<56x128xf32>
    %240 = arith.addf %237, %239 : vector<56x128xf32>
    %241 = vector.broadcast %37 : vector<1x128xf32> to vector<56x128xf32>
    %242 = arith.mulf %241, %16 : vector<56x128xf32>
    %243 = vector.broadcast %62 : vector<1x128xf32> to vector<56x128xf32>
    %244 = arith.mulf %243, %17 : vector<56x128xf32>
    %245 = arith.addf %242, %244 : vector<56x128xf32>
    %246 = vector.broadcast %87 : vector<1x128xf32> to vector<56x128xf32>
    %247 = arith.mulf %246, %18 : vector<56x128xf32>
    %248 = arith.addf %245, %247 : vector<56x128xf32>
    %249 = vector.broadcast %112 : vector<1x128xf32> to vector<56x128xf32>
    %250 = arith.mulf %249, %19 : vector<56x128xf32>
    %251 = arith.addf %248, %250 : vector<56x128xf32>
    %252 = vector.broadcast %137 : vector<1x128xf32> to vector<56x128xf32>
    %253 = arith.mulf %252, %20 : vector<56x128xf32>
    %254 = arith.addf %251, %253 : vector<56x128xf32>
    %255 = vector.broadcast %42 : vector<1x128xf32> to vector<56x128xf32>
    %256 = arith.mulf %255, %16 : vector<56x128xf32>
    %257 = vector.broadcast %67 : vector<1x128xf32> to vector<56x128xf32>
    %258 = arith.mulf %257, %17 : vector<56x128xf32>
    %259 = arith.addf %256, %258 : vector<56x128xf32>
    %260 = vector.broadcast %92 : vector<1x128xf32> to vector<56x128xf32>
    %261 = arith.mulf %260, %18 : vector<56x128xf32>
    %262 = arith.addf %259, %261 : vector<56x128xf32>
    %263 = vector.broadcast %117 : vector<1x128xf32> to vector<56x128xf32>
    %264 = arith.mulf %263, %19 : vector<56x128xf32>
    %265 = arith.addf %262, %264 : vector<56x128xf32>
    %266 = vector.broadcast %142 : vector<1x128xf32> to vector<56x128xf32>
    %267 = arith.mulf %266, %20 : vector<56x128xf32>
    %268 = arith.addf %265, %267 : vector<56x128xf32>
    %269 = vector.broadcast %47 : vector<1x128xf32> to vector<56x128xf32>
    %270 = arith.mulf %269, %16 : vector<56x128xf32>
    %271 = vector.broadcast %72 : vector<1x128xf32> to vector<56x128xf32>
    %272 = arith.mulf %271, %17 : vector<56x128xf32>
    %273 = arith.addf %270, %272 : vector<56x128xf32>
    %274 = vector.broadcast %97 : vector<1x128xf32> to vector<56x128xf32>
    %275 = arith.mulf %274, %18 : vector<56x128xf32>
    %276 = arith.addf %273, %275 : vector<56x128xf32>
    %277 = vector.broadcast %122 : vector<1x128xf32> to vector<56x128xf32>
    %278 = arith.mulf %277, %19 : vector<56x128xf32>
    %279 = arith.addf %276, %278 : vector<56x128xf32>
    %280 = vector.broadcast %147 : vector<1x128xf32> to vector<56x128xf32>
    %281 = arith.mulf %280, %20 : vector<56x128xf32>
    %282 = arith.addf %279, %281 : vector<56x128xf32>
    %283 = vector.broadcast %52 : vector<1x128xf32> to vector<56x128xf32>
    %284 = arith.mulf %283, %16 : vector<56x128xf32>
    %285 = vector.broadcast %77 : vector<1x128xf32> to vector<56x128xf32>
    %286 = arith.mulf %285, %17 : vector<56x128xf32>
    %287 = arith.addf %284, %286 : vector<56x128xf32>
    %288 = vector.broadcast %102 : vector<1x128xf32> to vector<56x128xf32>
    %289 = arith.mulf %288, %18 : vector<56x128xf32>
    %290 = arith.addf %287, %289 : vector<56x128xf32>
    %291 = vector.broadcast %127 : vector<1x128xf32> to vector<56x128xf32>
    %292 = arith.mulf %291, %19 : vector<56x128xf32>
    %293 = arith.addf %290, %292 : vector<56x128xf32>
    %294 = vector.broadcast %152 : vector<1x128xf32> to vector<56x128xf32>
    %295 = arith.mulf %294, %20 : vector<56x128xf32>
    %296 = arith.addf %293, %295 : vector<56x128xf32>
    %297 = tpu.concatenate %240, %254, %268, %282, %296 in 0 : vector<56x128xf32>, vector<56x128xf32>, vector<56x128xf32>, vector<56x128xf32>, vector<56x128xf32> -> vector<280x128xf32>
    %298 = arith.addf %27, %297 : vector<280x128xf32>
    %cst_59 = arith.constant 0.000000e+00 : f32
    %299 = vector.broadcast %cst_59 : f32 to vector<280x128xf32>
    %300 = arith.maximumf %298, %299 : vector<280x128xf32>
    %c0_60 = arith.constant 0 : index
    %c0_61 = arith.constant 0 : index
    %301 = vector.load %arg5[%c0_60, %c0_61] : memref<5x280xf32, #tpu.memory_space<vmem>>, vector<5x280xf32>
    %cst_62 = arith.constant dense<0.000000e+00> : vector<5x128xf32>
    %302 = tpu.matmul %301, %226, %cst_62 {dimension_numbers = #tpu.dot_dimension_numbers<[1], [0], [0], [1], [0, 0, 1, 1], [], []>} : vector<5x280xf32>, vector<280x128xf32>, vector<5x128xf32> -> vector<5x128xf32>
    %c0_63 = arith.constant 0 : index
    %c0_64 = arith.constant 0 : index
    %303 = vector.load %arg6[%c0_63, %c0_64] : memref<5x280xf32, #tpu.memory_space<vmem>>, vector<5x280xf32>
    %cst_65 = arith.constant dense<0.000000e+00> : vector<5x128xf32>
    %304 = tpu.matmul %303, %300, %cst_65 {dimension_numbers = #tpu.dot_dimension_numbers<[1], [0], [0], [1], [0, 0, 1, 1], [], []>} : vector<5x280xf32>, vector<280x128xf32>, vector<5x128xf32> -> vector<5x128xf32>
    %cst_66 = arith.constant dense<0xFF800000> : vector<128xf32>
    %305 = vector.multi_reduction <maximumf>, %302, %cst_66 [0] : vector<5x128xf32> to vector<128xf32>
    %306 = vector.shape_cast %305 : vector<128xf32> to vector<1x128xf32>
    %307 = vector.broadcast %306 : vector<1x128xf32> to vector<5x128xf32>
    %308 = arith.subf %302, %307 : vector<5x128xf32>
    %309 = math.exp %308 : vector<5x128xf32>
    %cst_67 = arith.constant dense<0.000000e+00> : vector<128xf32>
    %310 = vector.multi_reduction <add>, %309, %cst_67 [0] : vector<5x128xf32> to vector<128xf32>
    %311 = vector.shape_cast %310 : vector<128xf32> to vector<1x128xf32>
    %312 = tpu.reciprocal %311 {approx = true} : vector<1x128xf32> -> vector<1x128xf32>
    %313 = arith.mulf %311, %312 : vector<1x128xf32>
    %cst_68 = arith.constant 2.000000e+00 : f32
    %314 = vector.broadcast %cst_68 : f32 to vector<1x128xf32>
    %315 = arith.subf %314, %313 : vector<1x128xf32>
    %316 = arith.mulf %312, %315 : vector<1x128xf32>
    %317 = vector.broadcast %316 : vector<1x128xf32> to vector<5x128xf32>
    %318 = arith.mulf %309, %317 : vector<5x128xf32>
    %c0_69 = arith.constant 0 : index
    %c0_70 = arith.constant 0 : index
    %319 = vector.load %arg7[%c0_69, %c0_70] : memref<5x128xf32, #tpu.memory_space<vmem>>, vector<5x128xf32>
    tpu.vector_store %arg7[%c0_69, %c0_70], %318 {strides = array<i32>} : memref<5x128xf32, #tpu.memory_space<vmem>>, vector<5x128xf32>,
    %cst_71 = arith.constant dense<0xFF800000> : vector<128xf32>
    %320 = vector.multi_reduction <maximumf>, %304, %cst_71 [0] : vector<5x128xf32> to vector<128xf32>
    %321 = vector.shape_cast %320 : vector<128xf32> to vector<1x128xf32>
    %322 = vector.broadcast %321 : vector<1x128xf32> to vector<5x128xf32>
    %323 = arith.subf %304, %322 : vector<5x128xf32>
    %324 = math.exp %323 : vector<5x128xf32>
    %cst_72 = arith.constant dense<0.000000e+00> : vector<128xf32>
    %325 = vector.multi_reduction <add>, %324, %cst_72 [0] : vector<5x128xf32> to vector<128xf32>
    %326 = vector.shape_cast %325 : vector<128xf32> to vector<1x128xf32>
    %327 = tpu.reciprocal %326 {approx = true} : vector<1x128xf32> -> vector<1x128xf32>
    %328 = arith.mulf %326, %327 : vector<1x128xf32>
    %cst_73 = arith.constant 2.000000e+00 : f32
    %329 = vector.broadcast %cst_73 : f32 to vector<1x128xf32>
    %330 = arith.subf %329, %328 : vector<1x128xf32>
    %331 = arith.mulf %327, %330 : vector<1x128xf32>
    %332 = vector.broadcast %331 : vector<1x128xf32> to vector<5x128xf32>
    %333 = arith.mulf %324, %332 : vector<5x128xf32>
    %c0_74 = arith.constant 0 : index
    %c0_75 = arith.constant 0 : index
    %334 = vector.load %arg8[%c0_74, %c0_75] : memref<5x128xf32, #tpu.memory_space<vmem>>, vector<5x128xf32>
    tpu.vector_store %arg8[%c0_74, %c0_75], %333 {strides = array<i32>} : memref<5x128xf32, #tpu.memory_space<vmem>>, vector<5x128xf32>,
    return
  }
  func.func @transform_0(%arg0: i32) -> (i32, i32) {
    %c0_i32 = arith.constant 0 : i32
    %c0_i32_0 = arith.constant 0 : i32
    return %arg0, %c0_i32 : i32, i32
  }
  func.func @transform_1(%arg0: i32) -> (i32, i32) {
    %c0_i32 = arith.constant 0 : i32
    %c0_i32_0 = arith.constant 0 : i32
    return %arg0, %c0_i32 : i32, i32
  }
  func.func @transform_2(%arg0: i32) -> (i32, i32) {
    %c0_i32 = arith.constant 0 : i32
    %c0_i32_0 = arith.constant 0 : i32
    %c0_i32_1 = arith.constant 0 : i32
    return %c0_i32, %c0_i32_0 : i32, i32
  }
  func.func @transform_3(%arg0: i32) -> (i32, i32) {
    %c0_i32 = arith.constant 0 : i32
    %c0_i32_0 = arith.constant 0 : i32
    %c0_i32_1 = arith.constant 0 : i32
    return %c0_i32, %c0_i32_0 : i32, i32
  }
  func.func @transform_4(%arg0: i32) -> (i32, i32) {
    %c0_i32 = arith.constant 0 : i32
    %c0_i32_0 = arith.constant 0 : i32
    %c0_i32_1 = arith.constant 0 : i32
    return %c0_i32, %c0_i32_0 : i32, i32
  }
  func.func @transform_5(%arg0: i32) -> (i32, i32) {
    %c0_i32 = arith.constant 0 : i32
    %c0_i32_0 = arith.constant 0 : i32
    %c0_i32_1 = arith.constant 0 : i32
    return %c0_i32, %c0_i32_0 : i32, i32
  }
  func.func @transform_6(%arg0: i32) -> (i32, i32) {
    %c0_i32 = arith.constant 0 : i32
    %c0_i32_0 = arith.constant 0 : i32
    return %c0_i32, %arg0 : i32, i32
  }
  func.func @transform_7(%arg0: i32) -> (i32, i32) {
    %c0_i32 = arith.constant 0 : i32
    %c0_i32_0 = arith.constant 0 : i32
    return %c0_i32, %arg0 : i32, i32
  }
}

</mosaic_0001>

<llo_original>
// kernel: tpu_custom_call.1
$region0: #{tpu_custom_call.1}
  #allocation0 [shape = 'u32[]', space=smem, size = 0x4, offset = 0x4, fixed_abs, tag = 'smem constant byte address 0x4 - core index']
  #allocation1 [shape = 'u32[144,128]{1,0:T(1,128)}', space=vmem, size = 0x12000, scoped, tag = 'internal scratch']
  %s0 = inlined_call_operand.vmem [shape: f32[128,50], index: 0, kind: input, shape index: {}]
  %s1 = inlined_call_operand.vmem [shape: f32[128,50], index: 1, kind: input, shape index: {}]
  %s2 = inlined_call_operand.vmem [shape: f32[360,50], index: 2, kind: input, shape index: {}]
  %s3 = inlined_call_operand.vmem [shape: f32[360,50], index: 3, kind: input, shape index: {}]
  %s4 = inlined_call_operand.vmem [shape: f32[5,280], index: 4, kind: input, shape index: {}]
  %s5 = inlined_call_operand.vmem [shape: f32[5,280], index: 5, kind: input, shape index: {}]
  %s6 = inlined_call_operand.hbm [shape: f32[5,128], index: 6, kind: output, shape index: {0}]
  %s7 = inlined_call_operand.hbm [shape: f32[5,128], index: 7, kind: output, shape index: {1}]
  %8 = xla_tuple %s6, %s7
  %s9 = sld [smem:[#allocation0]]
  $region42: #{tpu_custom_call.1} parent=0
    _
  %s11 = ssub.s32 1, %s9
  %s12 = scalar_select 0, %s11, %s9
  $region1: #{tpu_custom_call.1} parent=0
    #allocation2 [shape = 'u8[4096]{0}', space=vmem, size = 0x1000, scoped, tag = 'output window, operand 0, single buffered']
    #allocation3 [shape = 's32[1]{0}', space=sflag, size = 0x4, scoped, tag = 'scoped memory for tpu_custom_call.1']
    #allocation4 [shape = 'u8[4096]{0}', space=vmem, size = 0x1000, scoped, tag = 'output window, operand 1, single buffered']
    #allocation5 [shape = 's32[1]{0}', space=sflag, size = 0x4, scoped, tag = 'scoped memory for tpu_custom_call.1']
    %13 = vsyncpa [#allocation3], 0
    %14 = vsyncpa [#allocation5], 0
    // Predicated region
    $region2: #{tpu_custom_call.1} parent=1 // pred_check
      _
    $region3: #{tpu_custom_call.1} parent=1 // pred_check_branch
      %16 = sbr.rel (0) target = $region5
    $region4: #{tpu_custom_call.1} parent=1 // pred_region
      _
    $region5: #{tpu_custom_call.1} parent=1 // pred_fallthru
      _
    // Predicated region
    $region6: #{tpu_custom_call.1} parent=1 // pred_check
      _
    $region7: #{tpu_custom_call.1} parent=1 // pred_check_branch
      %18 = sbr.rel (0) target = $region9
    $region8: #{tpu_custom_call.1} parent=1 // pred_region
      _
    $region9: #{tpu_custom_call.1} parent=1 // pred_fallthru
      _
    // Predicated region
    $region10: #{tpu_custom_call.1} parent=1 // pred_check
      _
    $region11: #{tpu_custom_call.1} parent=1 // pred_check_branch
      %20 = sbr.rel (0) target = $region13
    $region12: #{tpu_custom_call.1} parent=1 // pred_region
      _
    $region13: #{tpu_custom_call.1} parent=1 // pred_fallthru
      _
    // Predicated region
    $region14: #{tpu_custom_call.1} parent=1 // pred_check
      _
    $region15: #{tpu_custom_call.1} parent=1 // pred_check_branch
      %22 = sbr.rel (0) target = $region17
    $region16: #{tpu_custom_call.1} parent=1 // pred_region
      _
    $region17: #{tpu_custom_call.1} parent=1 // pred_fallthru
      _
    // Predicated region
    $region18: #{tpu_custom_call.1} parent=1 // pred_check
      _
    $region19: #{tpu_custom_call.1} parent=1 // pred_check_branch
      %24 = sbr.rel (0) target = $region21
    $region20: #{tpu_custom_call.1} parent=1 // pred_region
      _
    $region21: #{tpu_custom_call.1} parent=1 // pred_fallthru
      _
    // Predicated region
    $region22: #{tpu_custom_call.1} parent=1 // pred_check
      _
    $region23: #{tpu_custom_call.1} parent=1 // pred_check_branch
      %26 = sbr.rel (0) target = $region25
    $region24: #{tpu_custom_call.1} parent=1 // pred_region
      _
    $region25: #{tpu_custom_call.1} parent=1 // pred_fallthru
      _
    %v27 = vld [vmem:[%s0] sm:$0xff]
    %v28 = vld [vmem:[%s0 + $0x8] sm:$0xff]
    %v29 = vld [vmem:[%s0 + $0x10] sm:$0xff]
    %v30 = vld [vmem:[%s0 + $0x18] sm:$0xff]
    %v31 = vld [vmem:[%s0 + $0x20] sm:$0xff]
    %v32 = vld [vmem:[%s0 + $0x28] sm:$0xff]
    %v33 = vld [vmem:[%s0 + $0x30] sm:$0xff]
    %v34 = vld [vmem:[%s0 + $0x38] sm:$0xff]
    %v35 = vld [vmem:[%s0 + $0x40] sm:$0xff]
    %v36 = vld [vmem:[%s0 + $0x48] sm:$0xff]
    %v37 = vld [vmem:[%s0 + $0x50] sm:$0xff]
    %v38 = vld [vmem:[%s0 + $0x58] sm:$0xff]
    %v39 = vld [vmem:[%s0 + $0x60] sm:$0xff]
    %v40 = vld [vmem:[%s0 + $0x68] sm:$0xff]
    %v41 = vld [vmem:[%s0 + $0x70] sm:$0xff]
    %v42 = vld [vmem:[%s0 + $0x78] sm:$0xff]
    %v43 = vld [vmem:[%s1] sm:$0xff]
    %v44 = vld [vmem:[%s1 + $0x8] sm:$0xff]
    %v45 = vld [vmem:[%s1 + $0x10] sm:$0xff]
    %v46 = vld [vmem:[%s1 + $0x18] sm:$0xff]
    %v47 = vld [vmem:[%s1 + $0x20] sm:$0xff]
    %v48 = vld [vmem:[%s1 + $0x28] sm:$0xff]
    %v49 = vld [vmem:[%s1 + $0x30] sm:$0xff]
    %v50 = vld [vmem:[%s1 + $0x38] sm:$0xff]
    %v51 = vld [vmem:[%s1 + $0x40] sm:$0xff]
    %v52 = vld [vmem:[%s1 + $0x48] sm:$0xff]
    %v53 = vld [vmem:[%s1 + $0x50] sm:$0xff]
    %v54 = vld [vmem:[%s1 + $0x58] sm:$0xff]
    %v55 = vld [vmem:[%s1 + $0x60] sm:$0xff]
    %v56 = vld [vmem:[%s1 + $0x68] sm:$0xff]
    %v57 = vld [vmem:[%s1 + $0x70] sm:$0xff]
    %v58 = vld [vmem:[%s1 + $0x78] sm:$0xff]
    %v59 = vld [vmem:[%s2] sm:$0xff]
    %v60 = vld [vmem:[%s2 + $0x8] sm:$0xff]
    %v61 = vld [vmem:[%s2 + $0x10] sm:$0xff]
    %v62 = vld [vmem:[%s2 + $0x18] sm:$0xff]
    %v63 = vld [vmem:[%s2 + $0x20] sm:$0xff]
    %v64 = vld [vmem:[%s2 + $0x28] sm:$0xff]
    %v65 = vld [vmem:[%s2 + $0x30] sm:$0xff]
    %v66 = vld [vmem:[%s2 + $0x38] sm:$0xff]
    %v67 = vld [vmem:[%s2 + $0x40] sm:$0xff]
    %v68 = vld [vmem:[%s2 + $0x48] sm:$0xff]
    %v69 = vld [vmem:[%s2 + $0x50] sm:$0xff]
    %v70 = vld [vmem:[%s2 + $0x58] sm:$0xff]
    %v71 = vld [vmem:[%s2 + $0x60] sm:$0xff]
    %v72 = vld [vmem:[%s2 + $0x68] sm:$0xff]
    %v73 = vld [vmem:[%s2 + $0x70] sm:$0xff]
    %v74 = vld [vmem:[%s2 + $0x78] sm:$0xff]
    %v75 = vld [vmem:[%s2 + $0x80] sm:$0xff]
    %v76 = vld [vmem:[%s2 + $0x88] sm:$0xff]
    %v77 = vld [vmem:[%s2 + $0x90] sm:$0xff]
    %v78 = vld [vmem:[%s2 + $0x98] sm:$0xff]
    %v79 = vld [vmem:[%s2 + $0xa0] sm:$0xff]
    %v80 = vld [vmem:[%s2 + $0xa8] sm:$0xff]
    %v81 = vld [vmem:[%s2 + $0xb0] sm:$0xff]
    %v82 = vld [vmem:[%s2 + $0xb8] sm:$0xff]
    %v83 = vld [vmem:[%s2 + $0xc0] sm:$0xff]
    %v84 = vld [vmem:[%s2 + $0xc8] sm:$0xff]
    %v85 = vld [vmem:[%s2 + $0xd0] sm:$0xff]
    %v86 = vld [vmem:[%s2 + $0xd8] sm:$0xff]
    %v87 = vld [vmem:[%s2 + $0xe0] sm:$0xff]
    %v88 = vld [vmem:[%s2 + $0xe8] sm:$0xff]
    %v89 = vld [vmem:[%s2 + $0xf0] sm:$0xff]
    %v90 = vld [vmem:[%s2 + $0xf8] sm:$0xff]
    %v91 = vld [vmem:[%s2 + $0x100] sm:$0xff]
    %v92 = vld [vmem:[%s2 + $0x108] sm:$0xff]
    %v93 = vld [vmem:[%s2 + $0x110] sm:$0xff]
    %v94 = vld [vmem:[%s2 + $0x118] sm:$0xff]
    %v95 = vld [vmem:[%s2 + $0x120] sm:$0xff]
    %v96 = vld [vmem:[%s2 + $0x128] sm:$0xff]
    %v97 = vld [vmem:[%s2 + $0x130] sm:$0xff]
    %v98 = vld [vmem:[%s2 + $0x138] sm:$0xff]
    %v99 = vld [vmem:[%s2 + $0x140] sm:$0xff]
    %v100 = vld [vmem:[%s2 + $0x148] sm:$0xff]
    %v101 = vld [vmem:[%s2 + $0x150] sm:$0xff]
    %v102 = vld [vmem:[%s2 + $0x158] sm:$0xff]
    %v103 = vld [vmem:[%s2 + $0x160] sm:$0xff]
    %vm104 = vcmask 408576
    %v106 = vsel %vm104, %v59, 0
    %v109 = vsel %vm104, %v60, 0
    %v112 = vsel %vm104, %v61, 0
    %v115 = vsel %vm104, %v62, 0
    %v118 = vsel %vm104, %v63, 0
    %v121 = vsel %vm104, %v64, 0
    %v124 = vsel %vm104, %v65, 0
    %v127 = vsel %vm104, %v66, 0
    %v130 = vsel %vm104, %v67, 0
    %v133 = vsel %vm104, %v68, 0
    %v136 = vsel %vm104, %v69, 0
    %v139 = vsel %vm104, %v70, 0
    %v142 = vsel %vm104, %v71, 0
    %v145 = vsel %vm104, %v72, 0
    %v148 = vsel %vm104, %v73, 0
    %v151 = vsel %vm104, %v74, 0
    %v154 = vsel %vm104, %v75, 0
    %v157 = vsel %vm104, %v76, 0
    %v160 = vsel %vm104, %v77, 0
    %v163 = vsel %vm104, %v78, 0
    %v166 = vsel %vm104, %v79, 0
    %v169 = vsel %vm104, %v80, 0
    %v172 = vsel %vm104, %v81, 0
    %v175 = vsel %vm104, %v82, 0
    %v178 = vsel %vm104, %v83, 0
    %v181 = vsel %vm104, %v84, 0
    %v184 = vsel %vm104, %v85, 0
    %v187 = vsel %vm104, %v86, 0
    %v190 = vsel %vm104, %v87, 0
    %v193 = vsel %vm104, %v88, 0
    %v196 = vsel %vm104, %v89, 0
    %v199 = vsel %vm104, %v90, 0
    %v202 = vsel %vm104, %v91, 0
    %v205 = vsel %vm104, %v92, 0
    %v208 = vsel %vm104, %v93, 0
    %v211 = vsel %vm104, %v94, 0
    %v214 = vsel %vm104, %v95, 0
    %v217 = vsel %vm104, %v96, 0
    %v220 = vsel %vm104, %v97, 0
    %v223 = vsel %vm104, %v98, 0
    %v226 = vsel %vm104, %v99, 0
    %v229 = vsel %vm104, %v100, 0
    %v232 = vsel %vm104, %v101, 0
    %v235 = vsel %vm104, %v102, 0
    %v238 = vsel %vm104, %v103, 0
    %v241 = vsel %vm104, %v27, 0
    %v244 = vsel %vm104, %v28, 0
    %v247 = vsel %vm104, %v29, 0
    %v250 = vsel %vm104, %v30, 0
    %v253 = vsel %vm104, %v31, 0
    %v256 = vsel %vm104, %v32, 0
    %v259 = vsel %vm104, %v33, 0
    %v262 = vsel %vm104, %v34, 0
    %v265 = vsel %vm104, %v35, 0
    %v268 = vsel %vm104, %v36, 0
    %v271 = vsel %vm104, %v37, 0
    %v274 = vsel %vm104, %v38, 0
    %v277 = vsel %vm104, %v39, 0
    %v280 = vsel %vm104, %v40, 0
    %v283 = vsel %vm104, %v41, 0
    %v286 = vsel %vm104, %v42, 0
    %288 = vmatprep.subr.mxu0 0.0
    %289 = vmatpush1.xpose.msra.mxu0 %v241
    %290 = vmatprep.subr.mxu0 0.0
    %291 = vmatpush1.xpose.msra.mxu0 %v244
    %292 = vmatprep.subr.mxu0 0.0
    %293 = vmatpush1.xpose.msra.mxu0 %v247
    %294 = vmatprep.subr.mxu0 0.0
    %295 = vmatpush1.xpose.msra.mxu0 %v250
    %296 = vmatprep.subr.mxu0 0.0
    %297 = vmatpush1.xpose.msra.mxu0 %v253
    %298 = vmatprep.subr.mxu0 0.0
    %299 = vmatpush1.xpose.msra.mxu0 %v256
    %300 = vmatprep.subr.mxu0 0.0
    %301 = vmatpush1.xpose.msra.mxu0 %v259
    %302 = vmatprep.subr.mxu0 0.0
    %303 = vmatpush1.xpose.msra.mxu0 %v262
    %304 = vmatprep.subr.mxu0 0.0
    %305 = vmatpush1.xpose.msra.mxu0 %v265
    %306 = vmatprep.subr.mxu0 0.0
    %307 = vmatpush1.xpose.msra.mxu0 %v268
    %308 = vmatprep.subr.mxu0 0.0
    %309 = vmatpush1.xpose.msra.mxu0 %v271
    %310 = vmatprep.subr.mxu0 0.0
    %311 = vmatpush1.xpose.msra.mxu0 %v274
    %312 = vmatprep.subr.mxu0 0.0
    %313 = vmatpush1.xpose.msra.mxu0 %v277
    %314 = vmatprep.subr.mxu0 0.0
    %315 = vmatpush1.xpose.msra.mxu0 %v280
    %316 = vmatprep.subr.mxu0 0.0
    %317 = vmatpush1.xpose.msra.mxu0 %v283
    %318 = vmatprep.subr.mxu0 0.0
    %319 = vmatpush1.xpose.msra.mxu0 %v286
    %320 = vmatprep.subr.mxu0 0.0
    %321 = vmatpush1.xpose.msra.mxu0 0.0
    %322 = vmatprep.subr.mxu0 0.0
    %323 = vmatpush1.xpose.msra.mxu0 0.0
    %324 = vmatprep.subr.mxu0 0.0
    %325 = vmatpush1.xpose.msra.mxu0 0.0
    %326 = vmatprep.subr.mxu0 0.0
    %327 = vmatpush1.xpose.msra.mxu0 0.0
    %328 = vmatprep.subr.mxu0 0.0
    %329 = vmatpush1.xpose.msra.mxu0 0.0
    %330 = vmatprep.subr.mxu0 0.0
    %331 = vmatpush1.xpose.msra.mxu0 0.0
    %332 = vmatprep.subr.mxu0 0.0
    %333 = vmatpush1.xpose.msra.mxu0 0.0
    %334 = vmatprep.subr.mxu0 0.0
    %335 = vmatpush1.xpose.msra.mxu0 0.0
    %336 = vmatprep.subr.mxu0 0.0
    %337 = vmatpush1.xpose.msra.mxu0 0.0
    %338 = vmatprep.subr.mxu0 0.0
    %339 = vmatpush1.xpose.msra.mxu0 0.0
    %340 = vmatprep.subr.mxu0 0.0
    %341 = vmatpush1.xpose.msra.mxu0 0.0
    %342 = vmatprep.subr.mxu0 0.0
    %343 = vmatpush1.xpose.msra.mxu0 0.0
    %344 = vmatprep.subr.mxu0 0.0
    %345 = vmatpush1.xpose.msra.mxu0 0.0
    %346 = vmatprep.subr.mxu0 0.0
    %347 = vmatpush1.xpose.msra.mxu0 0.0
    %348 = vmatprep.subr.mxu0 0.0
    %349 = vmatpush1.xpose.msra.mxu0 0.0
    %350 = vmatprep.subr.mxu0 0.0
    %351 = vmatpush1.xpose.msra.mxu0 0.0
    %352 = vmatprep.mubr.f32.mxu0 0.0
    %353 = vmatmul.mubr.f32.gmra.mrb[0].mxu0 %v106
    %v354 = vpop.f32.mrb[0].mxu0
    %v355 = vadd.f32 0.0, %v354
    %v356 = vpop.f32.mrb[0].mxu0
    %357 = vmatprep.mubr.f32.mxu0 0.0
    %358 = vmatmul.mubr.f32.gmra.mrb[0].mxu0 %v109
    %v359 = vpop.f32.mrb[0].mxu0
    %v360 = vadd.f32 0.0, %v359
    %v361 = vpop.f32.mrb[0].mxu0
    %362 = vmatprep.mubr.f32.mxu0 0.0
    %363 = vmatmul.mubr.f32.gmra.mrb[0].mxu0 %v112
    %v364 = vpop.f32.mrb[0].mxu0
    %v365 = vadd.f32 0.0, %v364
    %v366 = vpop.f32.mrb[0].mxu0
    %367 = vmatprep.mubr.f32.mxu0 0.0
    %368 = vmatmul.mubr.f32.gmra.mrb[0].mxu0 %v115
    %v369 = vpop.f32.mrb[0].mxu0
    %v370 = vadd.f32 0.0, %v369
    %v371 = vpop.f32.mrb[0].mxu0
    %372 = vmatprep.mubr.f32.mxu0 0.0
    %373 = vmatmul.mubr.f32.gmra.mrb[0].mxu0 %v118
    %v374 = vpop.f32.mrb[0].mxu0
    %v375 = vadd.f32 0.0, %v374
    %v376 = vpop.f32.mrb[0].mxu0
    %377 = vmatprep.mubr.f32.mxu0 0.0
    %378 = vmatmul.mubr.f32.gmra.mrb[0].mxu0 %v121
    %v379 = vpop.f32.mrb[0].mxu0
    %v380 = vadd.f32 0.0, %v379
    %v381 = vpop.f32.mrb[0].mxu0
    %382 = vmatprep.mubr.f32.mxu0 0.0
    %383 = vmatmul.mubr.f32.gmra.mrb[0].mxu0 %v124
    %v384 = vpop.f32.mrb[0].mxu0
    %v385 = vadd.f32 0.0, %v384
    %v386 = vpop.f32.mrb[0].mxu0
    %387 = vmatprep.mubr.f32.mxu0 0.0
    %388 = vmatmul.mubr.f32.gmra.mrb[0].mxu0 %v127
    %v389 = vpop.f32.mrb[0].mxu0
    %v390 = vadd.f32 0.0, %v389
    %v391 = vpop.f32.mrb[0].mxu0
    %392 = vmatprep.mubr.f32.mxu0 0.0
    %393 = vmatmul.mubr.f32.gmra.mrb[0].mxu0 %v130
    %v394 = vpop.f32.mrb[0].mxu0
    %v395 = vadd.f32 0.0, %v394
    %v396 = vpop.f32.mrb[0].mxu0
    %397 = vmatprep.mubr.f32.mxu0 0.0
    %398 = vmatmul.mubr.f32.gmra.mrb[0].mxu0 %v133
    %v399 = vpop.f32.mrb[0].mxu0
    %v400 = vadd.f32 0.0, %v399
    %v401 = vpop.f32.mrb[0].mxu0
    %402 = vmatprep.mubr.f32.mxu0 0.0
    %403 = vmatmul.mubr.f32.gmra.mrb[0].mxu0 %v136
    %v404 = vpop.f32.mrb[0].mxu0
    %v405 = vadd.f32 0.0, %v404
    %v406 = vpop.f32.mrb[0].mxu0
    %407 = vmatprep.mubr.f32.mxu0 0.0
    %408 = vmatmul.mubr.f32.gmra.mrb[0].mxu0 %v139
    %v409 = vpop.f32.mrb[0].mxu0
    %v410 = vadd.f32 0.0, %v409
    %v411 = vpop.f32.mrb[0].mxu0
    %412 = vmatprep.mubr.f32.mxu0 0.0
    %413 = vmatmul.mubr.f32.gmra.mrb[0].mxu0 %v142
    %v414 = vpop.f32.mrb[0].mxu0
    %v415 = vadd.f32 0.0, %v414
    %v416 = vpop.f32.mrb[0].mxu0
    %417 = vmatprep.mubr.f32.mxu0 0.0
    %418 = vmatmul.mubr.f32.gmra.mrb[0].mxu0 %v145
    %v419 = vpop.f32.mrb[0].mxu0
    %v420 = vadd.f32 0.0, %v419
    %v421 = vpop.f32.mrb[0].mxu0
    %422 = vmatprep.mubr.f32.mxu0 0.0
    %423 = vmatmul.mubr.f32.gmra.mrb[0].mxu0 %v148
    %v424 = vpop.f32.mrb[0].mxu0
    %v425 = vadd.f32 0.0, %v424
    %v426 = vpop.f32.mrb[0].mxu0
    %427 = vmatprep.mubr.f32.mxu0 0.0
    %428 = vmatmul.mubr.f32.gmra.mrb[0].mxu0 %v151
    %v429 = vpop.f32.mrb[0].mxu0
    %v430 = vadd.f32 0.0, %v429
    %v431 = vpop.f32.mrb[0].mxu0
    %432 = vmatprep.mubr.f32.mxu0 0.0
    %433 = vmatmul.mubr.f32.gmra.mrb[0].mxu0 %v154
    %v434 = vpop.f32.mrb[0].mxu0
    %v435 = vadd.f32 0.0, %v434
    %v436 = vpop.f32.mrb[0].mxu0
    %437 = vmatprep.mubr.f32.mxu0 0.0
    %438 = vmatmul.mubr.f32.gmra.mrb[0].mxu0 %v157
    %v439 = vpop.f32.mrb[0].mxu0
    %v440 = vadd.f32 0.0, %v439
    %v441 = vpop.f32.mrb[0].mxu0
    %442 = vmatprep.mubr.f32.mxu0 0.0
    %443 = vmatmul.mubr.f32.gmra.mrb[0].mxu0 %v160
    %v444 = vpop.f32.mrb[0].mxu0
    %v445 = vadd.f32 0.0, %v444
    %v446 = vpop.f32.mrb[0].mxu0
    %447 = vmatprep.mubr.f32.mxu0 0.0
    %448 = vmatmul.mubr.f32.gmra.mrb[0].mxu0 %v163
    %v449 = vpop.f32.mrb[0].mxu0
    %v450 = vadd.f32 0.0, %v449
    %v451 = vpop.f32.mrb[0].mxu0
    %452 = vmatprep.mubr.f32.mxu0 0.0
    %453 = vmatmul.mubr.f32.gmra.mrb[0].mxu0 %v166
    %v454 = vpop.f32.mrb[0].mxu0
    %v455 = vadd.f32 0.0, %v454
    %v456 = vpop.f32.mrb[0].mxu0
    %457 = vmatprep.mubr.f32.mxu0 0.0
    %458 = vmatmul.mubr.f32.gmra.mrb[0].mxu0 %v169
    %v459 = vpop.f32.mrb[0].mxu0
    %v460 = vadd.f32 0.0, %v459
    %v461 = vpop.f32.mrb[0].mxu0
    %462 = vmatprep.mubr.f32.mxu0 0.0
    %463 = vmatmul.mubr.f32.gmra.mrb[0].mxu0 %v172
    %v464 = vpop.f32.mrb[0].mxu0
    %v465 = vadd.f32 0.0, %v464
    %v466 = vpop.f32.mrb[0].mxu0
    %467 = vmatprep.mubr.f32.mxu0 0.0
    %468 = vmatmul.mubr.f32.gmra.mrb[0].mxu0 %v175
    %v469 = vpop.f32.mrb[0].mxu0
    %v470 = vadd.f32 0.0, %v469
    %v471 = vpop.f32.mrb[0].mxu0
    %472 = vmatprep.mubr.f32.mxu0 0.0
    %473 = vmatmul.mubr.f32.gmra.mrb[0].mxu0 %v178
    %v474 = vpop.f32.mrb[0].mxu0
    %v475 = vadd.f32 0.0, %v474
    %v476 = vpop.f32.mrb[0].mxu0
    %477 = vmatprep.mubr.f32.mxu0 0.0
    %478 = vmatmul.mubr.f32.gmra.mrb[0].mxu0 %v181
    %v479 = vpop.f32.mrb[0].mxu0
    %v480 = vadd.f32 0.0, %v479
    %v481 = vpop.f32.mrb[0].mxu0
    %482 = vmatprep.mubr.f32.mxu0 0.0
    %483 = vmatmul.mubr.f32.gmra.mrb[0].mxu0 %v184
    %v484 = vpop.f32.mrb[0].mxu0
    %v485 = vadd.f32 0.0, %v484
    %v486 = vpop.f32.mrb[0].mxu0
    %487 = vmatprep.mubr.f32.mxu0 0.0
    %488 = vmatmul.mubr.f32.gmra.mrb[0].mxu0 %v187
    %v489 = vpop.f32.mrb[0].mxu0
    %v490 = vadd.f32 0.0, %v489
    %v491 = vpop.f32.mrb[0].mxu0
    %492 = vmatprep.mubr.f32.mxu0 0.0
    %493 = vmatmul.mubr.f32.gmra.mrb[0].mxu0 %v190
    %v494 = vpop.f32.mrb[0].mxu0
    %v495 = vadd.f32 0.0, %v494
    %v496 = vpop.f32.mrb[0].mxu0
    %497 = vmatprep.mubr.f32.mxu0 0.0
    %498 = vmatmul.mubr.f32.gmra.mrb[0].mxu0 %v193
    %v499 = vpop.f32.mrb[0].mxu0
    %v500 = vadd.f32 0.0, %v499
    %v501 = vpop.f32.mrb[0].mxu0
    %502 = vmatprep.mubr.f32.mxu0 0.0
    %503 = vmatmul.mubr.f32.gmra.mrb[0].mxu0 %v196
    %v504 = vpop.f32.mrb[0].mxu0
    %v505 = vadd.f32 0.0, %v504
    %v506 = vpop.f32.mrb[0].mxu0
    %507 = vmatprep.mubr.f32.mxu0 0.0
    %508 = vmatmul.mubr.f32.gmra.mrb[0].mxu0 %v199
    %v509 = vpop.f32.mrb[0].mxu0
    %v510 = vadd.f32 0.0, %v509
    %v511 = vpop.f32.mrb[0].mxu0
    %512 = vmatprep.mubr.f32.mxu0 0.0
    %513 = vmatmul.mubr.f32.gmra.mrb[0].mxu0 %v202
    %v514 = vpop.f32.mrb[0].mxu0
    %v515 = vadd.f32 0.0, %v514
    %v516 = vpop.f32.mrb[0].mxu0
    %517 = vmatprep.mubr.f32.mxu0 0.0
    %518 = vmatmul.mubr.f32.gmra.mrb[0].mxu0 %v205
    %v519 = vpop.f32.mrb[0].mxu0
    %v520 = vadd.f32 0.0, %v519
    %v521 = vpop.f32.mrb[0].mxu0
    %522 = vmatprep.mubr.f32.mxu0 0.0
    %523 = vmatmul.mubr.f32.gmra.mrb[0].mxu0 %v208
    %v524 = vpop.f32.mrb[0].mxu0
    %v525 = vadd.f32 0.0, %v524
    %v526 = vpop.f32.mrb[0].mxu0
    %527 = vmatprep.mubr.f32.mxu0 0.0
    %528 = vmatmul.mubr.f32.gmra.mrb[0].mxu0 %v211
    %v529 = vpop.f32.mrb[0].mxu0
    %v530 = vadd.f32 0.0, %v529
    %v531 = vpop.f32.mrb[0].mxu0
    %532 = vmatprep.mubr.f32.mxu0 0.0
    %533 = vmatmul.mubr.f32.gmra.mrb[0].mxu0 %v214
    %v534 = vpop.f32.mrb[0].mxu0
    %v535 = vadd.f32 0.0, %v534
    %v536 = vpop.f32.mrb[0].mxu0
    %537 = vmatprep.mubr.f32.mxu0 0.0
    %538 = vmatmul.mubr.f32.gmra.mrb[0].mxu0 %v217
    %v539 = vpop.f32.mrb[0].mxu0
    %v540 = vadd.f32 0.0, %v539
    %v541 = vpop.f32.mrb[0].mxu0
    %542 = vmatprep.mubr.f32.mxu0 0.0
    %543 = vmatmul.mubr.f32.gmra.mrb[0].mxu0 %v220
    %v544 = vpop.f32.mrb[0].mxu0
    %v545 = vadd.f32 0.0, %v544
    %v546 = vpop.f32.mrb[0].mxu0
    %547 = vmatprep.mubr.f32.mxu0 0.0
    %548 = vmatmul.mubr.f32.gmra.mrb[0].mxu0 %v223
    %v549 = vpop.f32.mrb[0].mxu0
    %v550 = vadd.f32 0.0, %v549
    %v551 = vpop.f32.mrb[0].mxu0
    %552 = vmatprep.mubr.f32.mxu0 0.0
    %553 = vmatmul.mubr.f32.gmra.mrb[0].mxu0 %v226
    %v554 = vpop.f32.mrb[0].mxu0
    %v555 = vadd.f32 0.0, %v554
    %v556 = vpop.f32.mrb[0].mxu0
    %557 = vmatprep.mubr.f32.mxu0 0.0
    %558 = vmatmul.mubr.f32.gmra.mrb[0].mxu0 %v229
    %v559 = vpop.f32.mrb[0].mxu0
    %v560 = vadd.f32 0.0, %v559
    %v561 = vpop.f32.mrb[0].mxu0
    %562 = vmatprep.mubr.f32.mxu0 0.0
    %563 = vmatmul.mubr.f32.gmra.mrb[0].mxu0 %v232
    %v564 = vpop.f32.mrb[0].mxu0
    %v565 = vadd.f32 0.0, %v564
    %v566 = vpop.f32.mrb[0].mxu0
    %567 = vmatprep.mubr.f32.mxu0 0.0
    %568 = vmatmul.mubr.f32.gmra.mrb[0].mxu0 %v235
    %v569 = vpop.f32.mrb[0].mxu0
    %v570 = vadd.f32 0.0, %v569
    %v571 = vpop.f32.mrb[0].mxu0
    %572 = vmatprep.mubr.f32.mxu0 0.0
    %573 = vmatmul.mubr.f32.gmra.mrb[0].mxu0 %v238
    %v574 = vpop.f32.mrb[0].mxu0
    %v575 = vadd.f32 0.0, %v574
    %v576 = vpop.f32.mrb[0].mxu0
    %577 = vdwg.mxu0
    %v578 = vld [vmem:[%s3] sm:$0xff]
    %v579 = vld [vmem:[%s3 + $0x8] sm:$0xff]
    %v580 = vld [vmem:[%s3 + $0x10] sm:$0xff]
    %v581 = vld [vmem:[%s3 + $0x18] sm:$0xff]
    %v582 = vld [vmem:[%s3 + $0x20] sm:$0xff]
    %v583 = vld [vmem:[%s3 + $0x28] sm:$0xff]
    %v584 = vld [vmem:[%s3 + $0x30] sm:$0xff]
    %v585 = vld [vmem:[%s3 + $0x38] sm:$0xff]
    %v586 = vld [vmem:[%s3 + $0x40] sm:$0xff]
    %v587 = vld [vmem:[%s3 + $0x48] sm:$0xff]
    %v588 = vld [vmem:[%s3 + $0x50] sm:$0xff]
    %v589 = vld [vmem:[%s3 + $0x58] sm:$0xff]
    %v590 = vld [vmem:[%s3 + $0x60] sm:$0xff]
    %v591 = vld [vmem:[%s3 + $0x68] sm:$0xff]
    %v592 = vld [vmem:[%s3 + $0x70] sm:$0xff]
    %v593 = vld [vmem:[%s3 + $0x78] sm:$0xff]
    %v594 = vld [vmem:[%s3 + $0x80] sm:$0xff]
    %v595 = vld [vmem:[%s3 + $0x88] sm:$0xff]
    %v596 = vld [vmem:[%s3 + $0x90] sm:$0xff]
    %v597 = vld [vmem:[%s3 + $0x98] sm:$0xff]
    %v598 = vld [vmem:[%s3 + $0xa0] sm:$0xff]
    %v599 = vld [vmem:[%s3 + $0xa8] sm:$0xff]
    %v600 = vld [vmem:[%s3 + $0xb0] sm:$0xff]
    %v601 = vld [vmem:[%s3 + $0xb8] sm:$0xff]
    %v602 = vld [vmem:[%s3 + $0xc0] sm:$0xff]
    %v603 = vld [vmem:[%s3 + $0xc8] sm:$0xff]
    %v604 = vld [vmem:[%s3 + $0xd0] sm:$0xff]
    %v605 = vld [vmem:[%s3 + $0xd8] sm:$0xff]
    %v606 = vld [vmem:[%s3 + $0xe0] sm:$0xff]
    %v607 = vld [vmem:[%s3 + $0xe8] sm:$0xff]
    %v608 = vld [vmem:[%s3 + $0xf0] sm:$0xff]
    %v609 = vld [vmem:[%s3 + $0xf8] sm:$0xff]
    %v610 = vld [vmem:[%s3 + $0x100] sm:$0xff]
    %v611 = vld [vmem:[%s3 + $0x108] sm:$0xff]
    %v612 = vld [vmem:[%s3 + $0x110] sm:$0xff]
    %v613 = vld [vmem:[%s3 + $0x118] sm:$0xff]
    %v614 = vld [vmem:[%s3 + $0x120] sm:$0xff]
    %v615 = vld [vmem:[%s3 + $0x128] sm:$0xff]
    %v616 = vld [vmem:[%s3 + $0x130] sm:$0xff]
    %v617 = vld [vmem:[%s3 + $0x138] sm:$0xff]
    %v618 = vld [vmem:[%s3 + $0x140] sm:$0xff]
    %v619 = vld [vmem:[%s3 + $0x148] sm:$0xff]
    %v620 = vld [vmem:[%s3 + $0x150] sm:$0xff]
    %v621 = vld [vmem:[%s3 + $0x158] sm:$0xff]
    %v622 = vld [vmem:[%s3 + $0x160] sm:$0xff]
    %v624 = vsel %vm104, %v578, 0
    %v627 = vsel %vm104, %v579, 0
    %v630 = vsel %vm104, %v580, 0
    %v633 = vsel %vm104, %v581, 0
    %v636 = vsel %vm104, %v582, 0
    %v639 = vsel %vm104, %v583, 0
    %v642 = vsel %vm104, %v584, 0
    %v645 = vsel %vm104, %v585, 0
    %v648 = vsel %vm104, %v586, 0
    %v651 = vsel %vm104, %v587, 0
    %v654 = vsel %vm104, %v588, 0
    %v657 = vsel %vm104, %v589, 0
    %v660 = vsel %vm104, %v590, 0
    %v663 = vsel %vm104, %v591, 0
    %v666 = vsel %vm104, %v592, 0
    %v669 = vsel %vm104, %v593, 0
    %v672 = vsel %vm104, %v594, 0
    %v675 = vsel %vm104, %v595, 0
    %v678 = vsel %vm104, %v596, 0
    %v681 = vsel %vm104, %v597, 0
    %v684 = vsel %vm104, %v598, 0
    %v687 = vsel %vm104, %v599, 0
    %v690 = vsel %vm104, %v600, 0
    %v693 = vsel %vm104, %v601, 0
    %v696 = vsel %vm104, %v602, 0
    %v699 = vsel %vm104, %v603, 0
    %v702 = vsel %vm104, %v604, 0
    %v705 = vsel %vm104, %v605, 0
    %v708 = vsel %vm104, %v606, 0
    %v711 = vsel %vm104, %v607, 0
    %v714 = vsel %vm104, %v608, 0
    %v717 = vsel %vm104, %v609, 0
    %v720 = vsel %vm104, %v610, 0
    %v723 = vsel %vm104, %v611, 0
    %v726 = vsel %vm104, %v612, 0
    %v729 = vsel %vm104, %v613, 0
    %v732 = vsel %vm104, %v614, 0
    %v735 = vsel %vm104, %v615, 0
    %v738 = vsel %vm104, %v616, 0
    %v741 = vsel %vm104, %v617, 0
    %v744 = vsel %vm104, %v618, 0
    %v747 = vsel %vm104, %v619, 0
    %v750 = vsel %vm104, %v620, 0
    %v753 = vsel %vm104, %v621, 0
    %v756 = vsel %vm104, %v622, 0
    %v759 = vsel %vm104, %v43, 0
    %v762 = vsel %vm104, %v44, 0
    %v765 = vsel %vm104, %v45, 0
    %v768 = vsel %vm104, %v46, 0
    %v771 = vsel %vm104, %v47, 0
    %v774 = vsel %vm104, %v48, 0
    %v777 = vsel %vm104, %v49, 0
    %v780 = vsel %vm104, %v50, 0
    %v783 = vsel %vm104, %v51, 0
    %v786 = vsel %vm104, %v52, 0
    %v789 = vsel %vm104, %v53, 0
    %v792 = vsel %vm104, %v54, 0
    %v795 = vsel %vm104, %v55, 0
    %v798 = vsel %vm104, %v56, 0
    %v801 = vsel %vm104, %v57, 0
    %v804 = vsel %vm104, %v58, 0
    %806 = vmatprep.subr.mxu0 0.0
    %807 = vmatpush1.xpose.msra.mxu0 %v759
    %808 = vmatprep.subr.mxu0 0.0
    %809 = vmatpush1.xpose.msra.mxu0 %v762
    %810 = vmatprep.subr.mxu0 0.0
    %811 = vmatpush1.xpose.msra.mxu0 %v765
    %812 = vmatprep.subr.mxu0 0.0
    %813 = vmatpush1.xpose.msra.mxu0 %v768
    %814 = vmatprep.subr.mxu0 0.0
    %815 = vmatpush1.xpose.msra.mxu0 %v771
    %816 = vmatprep.subr.mxu0 0.0
    %817 = vmatpush1.xpose.msra.mxu0 %v774
    %818 = vmatprep.subr.mxu0 0.0
    %819 = vmatpush1.xpose.msra.mxu0 %v777
    %820 = vmatprep.subr.mxu0 0.0
    %821 = vmatpush1.xpose.msra.mxu0 %v780
    %822 = vmatprep.subr.mxu0 0.0
    %823 = vmatpush1.xpose.msra.mxu0 %v783
    %824 = vmatprep.subr.mxu0 0.0
    %825 = vmatpush1.xpose.msra.mxu0 %v786
    %826 = vmatprep.subr.mxu0 0.0
    %827 = vmatpush1.xpose.msra.mxu0 %v789
    %828 = vmatprep.subr.mxu0 0.0
    %829 = vmatpush1.xpose.msra.mxu0 %v792
    %830 = vmatprep.subr.mxu0 0.0
    %831 = vmatpush1.xpose.msra.mxu0 %v795
    %832 = vmatprep.subr.mxu0 0.0
    %833 = vmatpush1.xpose.msra.mxu0 %v798
    %834 = vmatprep.subr.mxu0 0.0
    %835 = vmatpush1.xpose.msra.mxu0 %v801
    %836 = vmatprep.subr.mxu0 0.0
    %837 = vmatpush1.xpose.msra.mxu0 %v804
    %838 = vmatprep.subr.mxu0 0.0
    %839 = vmatpush1.xpose.msra.mxu0 0.0
    %840 = vmatprep.subr.mxu0 0.0
    %841 = vmatpush1.xpose.msra.mxu0 0.0
    %842 = vmatprep.subr.mxu0 0.0
    %843 = vmatpush1.xpose.msra.mxu0 0.0
    %844 = vmatprep.subr.mxu0 0.0
    %845 = vmatpush1.xpose.msra.mxu0 0.0
    %846 = vmatprep.subr.mxu0 0.0
    %847 = vmatpush1.xpose.msra.mxu0 0.0
    %848 = vmatprep.subr.mxu0 0.0
    %849 = vmatpush1.xpose.msra.mxu0 0.0
    %850 = vmatprep.subr.mxu0 0.0
    %851 = vmatpush1.xpose.msra.mxu0 0.0
    %852 = vmatprep.subr.mxu0 0.0
    %853 = vmatpush1.xpose.msra.mxu0 0.0
    %854 = vmatprep.subr.mxu0 0.0
    %855 = vmatpush1.xpose.msra.mxu0 0.0
    %856 = vmatprep.subr.mxu0 0.0
    %857 = vmatpush1.xpose.msra.mxu0 0.0
    %858 = vmatprep.subr.mxu0 0.0
    %859 = vmatpush1.xpose.msra.mxu0 0.0
    %860 = vmatprep.subr.mxu0 0.0
    %861 = vmatpush1.xpose.msra.mxu0 0.0
    %862 = vmatprep.subr.mxu0 0.0
    %863 = vmatpush1.xpose.msra.mxu0 0.0
    %864 = vmatprep.subr.mxu0 0.0
    %865 = vmatpush1.xpose.msra.mxu0 0.0
    %866 = vmatprep.subr.mxu0 0.0
    %867 = vmatpush1.xpose.msra.mxu0 0.0
    %868 = vmatprep.subr.mxu0 0.0
    %869 = vmatpush1.xpose.msra.mxu0 0.0
    %870 = vmatprep.mubr.f32.mxu0 0.0
    %871 = vmatmul.mubr.f32.gmra.mrb[0].mxu0 %v624
    %v872 = vpop.f32.mrb[0].mxu0
    %v873 = vadd.f32 0.0, %v872
    %v874 = vpop.f32.mrb[0].mxu0
    %875 = vmatprep.mubr.f32.mxu0 0.0
    %876 = vmatmul.mubr.f32.gmra.mrb[0].mxu0 %v627
    %v877 = vpop.f32.mrb[0].mxu0
    %v878 = vadd.f32 0.0, %v877
    %v879 = vpop.f32.mrb[0].mxu0
    %880 = vmatprep.mubr.f32.mxu0 0.0
    %881 = vmatmul.mubr.f32.gmra.mrb[0].mxu0 %v630
    %v882 = vpop.f32.mrb[0].mxu0
    %v883 = vadd.f32 0.0, %v882
    %v884 = vpop.f32.mrb[0].mxu0
    %885 = vmatprep.mubr.f32.mxu0 0.0
    %886 = vmatmul.mubr.f32.gmra.mrb[0].mxu0 %v633
    %v887 = vpop.f32.mrb[0].mxu0
    %v888 = vadd.f32 0.0, %v887
    %v889 = vpop.f32.mrb[0].mxu0
    %890 = vmatprep.mubr.f32.mxu0 0.0
    %891 = vmatmul.mubr.f32.gmra.mrb[0].mxu0 %v636
    %v892 = vpop.f32.mrb[0].mxu0
    %v893 = vadd.f32 0.0, %v892
    %v894 = vpop.f32.mrb[0].mxu0
    %895 = vmatprep.mubr.f32.mxu0 0.0
    %896 = vmatmul.mubr.f32.gmra.mrb[0].mxu0 %v639
    %v897 = vpop.f32.mrb[0].mxu0
    %v898 = vadd.f32 0.0, %v897
    %v899 = vpop.f32.mrb[0].mxu0
    %900 = vmatprep.mubr.f32.mxu0 0.0
    %901 = vmatmul.mubr.f32.gmra.mrb[0].mxu0 %v642
    %v902 = vpop.f32.mrb[0].mxu0
    %v903 = vadd.f32 0.0, %v902
    %v904 = vpop.f32.mrb[0].mxu0
    %905 = vmatprep.mubr.f32.mxu0 0.0
    %906 = vmatmul.mubr.f32.gmra.mrb[0].mxu0 %v645
    %v907 = vpop.f32.mrb[0].mxu0
    %v908 = vadd.f32 0.0, %v907
    %v909 = vpop.f32.mrb[0].mxu0
    %910 = vmatprep.mubr.f32.mxu0 0.0
    %911 = vmatmul.mubr.f32.gmra.mrb[0].mxu0 %v648
    %v912 = vpop.f32.mrb[0].mxu0
    %v913 = vadd.f32 0.0, %v912
    %v914 = vpop.f32.mrb[0].mxu0
    %915 = vmatprep.mubr.f32.mxu0 0.0
    %916 = vmatmul.mubr.f32.gmra.mrb[0].mxu0 %v651
    %v917 = vpop.f32.mrb[0].mxu0
    %v918 = vadd.f32 0.0, %v917
    %v919 = vpop.f32.mrb[0].mxu0
    %920 = vmatprep.mubr.f32.mxu0 0.0
    %921 = vmatmul.mubr.f32.gmra.mrb[0].mxu0 %v654
    %v922 = vpop.f32.mrb[0].mxu0
    %v923 = vadd.f32 0.0, %v922
    %v924 = vpop.f32.mrb[0].mxu0
    %925 = vmatprep.mubr.f32.mxu0 0.0
    %926 = vmatmul.mubr.f32.gmra.mrb[0].mxu0 %v657
    %v927 = vpop.f32.mrb[0].mxu0
    %v928 = vadd.f32 0.0, %v927
    %v929 = vpop.f32.mrb[0].mxu0
    %930 = vmatprep.mubr.f32.mxu0 0.0
    %931 = vmatmul.mubr.f32.gmra.mrb[0].mxu0 %v660
    %v932 = vpop.f32.mrb[0].mxu0
    %v933 = vadd.f32 0.0, %v932
    %v934 = vpop.f32.mrb[0].mxu0
    %935 = vmatprep.mubr.f32.mxu0 0.0
    %936 = vmatmul.mubr.f32.gmra.mrb[0].mxu0 %v663
    %v937 = vpop.f32.mrb[0].mxu0
    %v938 = vadd.f32 0.0, %v937
    %v939 = vpop.f32.mrb[0].mxu0
    %940 = vmatprep.mubr.f32.mxu0 0.0
    %941 = vmatmul.mubr.f32.gmra.mrb[0].mxu0 %v666
    %v942 = vpop.f32.mrb[0].mxu0
    %v943 = vadd.f32 0.0, %v942
    %v944 = vpop.f32.mrb[0].mxu0
    %945 = vmatprep.mubr.f32.mxu0 0.0
    %946 = vmatmul.mubr.f32.gmra.mrb[0].mxu0 %v669
    %v947 = vpop.f32.mrb[0].mxu0
    %v948 = vadd.f32 0.0, %v947
    %v949 = vpop.f32.mrb[0].mxu0
    %950 = vmatprep.mubr.f32.mxu0 0.0
    %951 = vmatmul.mubr.f32.gmra.mrb[0].mxu0 %v672
    %v952 = vpop.f32.mrb[0].mxu0
    %v953 = vadd.f32 0.0, %v952
    %v954 = vpop.f32.mrb[0].mxu0
    %955 = vmatprep.mubr.f32.mxu0 0.0
    %956 = vmatmul.mubr.f32.gmra.mrb[0].mxu0 %v675
    %v957 = vpop.f32.mrb[0].mxu0
    %v958 = vadd.f32 0.0, %v957
    %v959 = vpop.f32.mrb[0].mxu0
    %960 = vmatprep.mubr.f32.mxu0 0.0
    %961 = vmatmul.mubr.f32.gmra.mrb[0].mxu0 %v678
    %v962 = vpop.f32.mrb[0].mxu0
    %v963 = vadd.f32 0.0, %v962
    %v964 = vpop.f32.mrb[0].mxu0
    %965 = vmatprep.mubr.f32.mxu0 0.0
    %966 = vmatmul.mubr.f32.gmra.mrb[0].mxu0 %v681
    %v967 = vpop.f32.mrb[0].mxu0
    %v968 = vadd.f32 0.0, %v967
    %v969 = vpop.f32.mrb[0].mxu0
    %970 = vmatprep.mubr.f32.mxu0 0.0
    %971 = vmatmul.mubr.f32.gmra.mrb[0].mxu0 %v684
    %v972 = vpop.f32.mrb[0].mxu0
    %v973 = vadd.f32 0.0, %v972
    %v974 = vpop.f32.mrb[0].mxu0
    %975 = vmatprep.mubr.f32.mxu0 0.0
    %976 = vmatmul.mubr.f32.gmra.mrb[0].mxu0 %v687
    %v977 = vpop.f32.mrb[0].mxu0
    %v978 = vadd.f32 0.0, %v977
    %v979 = vpop.f32.mrb[0].mxu0
    %980 = vmatprep.mubr.f32.mxu0 0.0
    %981 = vmatmul.mubr.f32.gmra.mrb[0].mxu0 %v690
    %v982 = vpop.f32.mrb[0].mxu0
    %v983 = vadd.f32 0.0, %v982
    %v984 = vpop.f32.mrb[0].mxu0
    %985 = vmatprep.mubr.f32.mxu0 0.0
    %986 = vmatmul.mubr.f32.gmra.mrb[0].mxu0 %v693
    %v987 = vpop.f32.mrb[0].mxu0
    %v988 = vadd.f32 0.0, %v987
    %v989 = vpop.f32.mrb[0].mxu0
    %990 = vmatprep.mubr.f32.mxu0 0.0
    %991 = vmatmul.mubr.f32.gmra.mrb[0].mxu0 %v696
    %v992 = vpop.f32.mrb[0].mxu0
    %v993 = vadd.f32 0.0, %v992
    %v994 = vpop.f32.mrb[0].mxu0
    %995 = vmatprep.mubr.f32.mxu0 0.0
    %996 = vmatmul.mubr.f32.gmra.mrb[0].mxu0 %v699
    %v997 = vpop.f32.mrb[0].mxu0
    %v998 = vadd.f32 0.0, %v997
    %v999 = vpop.f32.mrb[0].mxu0
    %1000 = vmatprep.mubr.f32.mxu0 0.0
    %1001 = vmatmul.mubr.f32.gmra.mrb[0].mxu0 %v702
    %v1002 = vpop.f32.mrb[0].mxu0
    %v1003 = vadd.f32 0.0, %v1002
    %v1004 = vpop.f32.mrb[0].mxu0
    %1005 = vmatprep.mubr.f32.mxu0 0.0
    %1006 = vmatmul.mubr.f32.gmra.mrb[0].mxu0 %v705
    %v1007 = vpop.f32.mrb[0].mxu0
    %v1008 = vadd.f32 0.0, %v1007
    %v1009 = vpop.f32.mrb[0].mxu0
    %1010 = vmatprep.mubr.f32.mxu0 0.0
    %1011 = vmatmul.mubr.f32.gmra.mrb[0].mxu0 %v708
    %v1012 = vpop.f32.mrb[0].mxu0
    %v1013 = vadd.f32 0.0, %v1012
    %v1014 = vpop.f32.mrb[0].mxu0
    %1015 = vmatprep.mubr.f32.mxu0 0.0
    %1016 = vmatmul.mubr.f32.gmra.mrb[0].mxu0 %v711
    %v1017 = vpop.f32.mrb[0].mxu0
    %v1018 = vadd.f32 0.0, %v1017
    %v1019 = vpop.f32.mrb[0].mxu0
    %1020 = vmatprep.mubr.f32.mxu0 0.0
    %1021 = vmatmul.mubr.f32.gmra.mrb[0].mxu0 %v714
    %v1022 = vpop.f32.mrb[0].mxu0
    %v1023 = vadd.f32 0.0, %v1022
    %v1024 = vpop.f32.mrb[0].mxu0
    %1025 = vmatprep.mubr.f32.mxu0 0.0
    %1026 = vmatmul.mubr.f32.gmra.mrb[0].mxu0 %v717
    %v1027 = vpop.f32.mrb[0].mxu0
    %v1028 = vadd.f32 0.0, %v1027
    %v1029 = vpop.f32.mrb[0].mxu0
    %1030 = vmatprep.mubr.f32.mxu0 0.0
    %1031 = vmatmul.mubr.f32.gmra.mrb[0].mxu0 %v720
    %v1032 = vpop.f32.mrb[0].mxu0
    %v1033 = vadd.f32 0.0, %v1032
    %v1034 = vpop.f32.mrb[0].mxu0
    %1035 = vmatprep.mubr.f32.mxu0 0.0
    %1036 = vmatmul.mubr.f32.gmra.mrb[0].mxu0 %v723
    %v1037 = vpop.f32.mrb[0].mxu0
    %v1038 = vadd.f32 0.0, %v1037
    %v1039 = vpop.f32.mrb[0].mxu0
    %1040 = vmatprep.mubr.f32.mxu0 0.0
    %1041 = vmatmul.mubr.f32.gmra.mrb[0].mxu0 %v726
    %v1042 = vpop.f32.mrb[0].mxu0
    %v1043 = vadd.f32 0.0, %v1042
    %v1044 = vpop.f32.mrb[0].mxu0
    %1045 = vmatprep.mubr.f32.mxu0 0.0
    %1046 = vmatmul.mubr.f32.gmra.mrb[0].mxu0 %v729
    %v1047 = vpop.f32.mrb[0].mxu0
    %v1048 = vadd.f32 0.0, %v1047
    %v1049 = vpop.f32.mrb[0].mxu0
    %1050 = vmatprep.mubr.f32.mxu0 0.0
    %1051 = vmatmul.mubr.f32.gmra.mrb[0].mxu0 %v732
    %v1052 = vpop.f32.mrb[0].mxu0
    %v1053 = vadd.f32 0.0, %v1052
    %v1054 = vpop.f32.mrb[0].mxu0
    %1055 = vmatprep.mubr.f32.mxu0 0.0
    %1056 = vmatmul.mubr.f32.gmra.mrb[0].mxu0 %v735
    %v1057 = vpop.f32.mrb[0].mxu0
    %v1058 = vadd.f32 0.0, %v1057
    %v1059 = vpop.f32.mrb[0].mxu0
    %1060 = vmatprep.mubr.f32.mxu0 0.0
    %1061 = vmatmul.mubr.f32.gmra.mrb[0].mxu0 %v738
    %v1062 = vpop.f32.mrb[0].mxu0
    %v1063 = vadd.f32 0.0, %v1062
    %v1064 = vpop.f32.mrb[0].mxu0
    %1065 = vmatprep.mubr.f32.mxu0 0.0
    %1066 = vmatmul.mubr.f32.gmra.mrb[0].mxu0 %v741
    %v1067 = vpop.f32.mrb[0].mxu0
    %v1068 = vadd.f32 0.0, %v1067
    %v1069 = vpop.f32.mrb[0].mxu0
    %1070 = vmatprep.mubr.f32.mxu0 0.0
    %1071 = vmatmul.mubr.f32.gmra.mrb[0].mxu0 %v744
    %v1072 = vpop.f32.mrb[0].mxu0
    %v1073 = vadd.f32 0.0, %v1072
    %v1074 = vpop.f32.mrb[0].mxu0
    %1075 = vmatprep.mubr.f32.mxu0 0.0
    %1076 = vmatmul.mubr.f32.gmra.mrb[0].mxu0 %v747
    %v1077 = vpop.f32.mrb[0].mxu0
    %v1078 = vadd.f32 0.0, %v1077
    %v1079 = vpop.f32.mrb[0].mxu0
    %1080 = vmatprep.mubr.f32.mxu0 0.0
    %1081 = vmatmul.mubr.f32.gmra.mrb[0].mxu0 %v750
    %v1082 = vpop.f32.mrb[0].mxu0
    %v1083 = vadd.f32 0.0, %v1082
    %v1084 = vpop.f32.mrb[0].mxu0
    %1085 = vmatprep.mubr.f32.mxu0 0.0
    %1086 = vmatmul.mubr.f32.gmra.mrb[0].mxu0 %v753
    %v1087 = vpop.f32.mrb[0].mxu0
    %v1088 = vadd.f32 0.0, %v1087
    %v1089 = vpop.f32.mrb[0].mxu0
    %1090 = vmatprep.mubr.f32.mxu0 0.0
    %1091 = vmatmul.mubr.f32.gmra.mrb[0].mxu0 %v756
    %v1092 = vpop.f32.mrb[0].mxu0
    %v1093 = vadd.f32 0.0, %v1092
    %v1094 = vpop.f32.mrb[0].mxu0
    %1095 = vdwg.mxu0
    %v1096 = vmul.f32 %v355, %v873
    %v1097 = vmul.f32 %v360, %v878
    %v1098 = vadd.f32 %v1096, %v1097
    %v1099 = vrot.slane %v1098, 4
    %v1100 = vadd.f32 %v1098, %v1099
    %v1101 = vrot.slane %v1100, 2
    %v1102 = vadd.f32 %v1100, %v1101
    %v1103 = vrot.slane %v1102, 1
    %v1104 = vadd.f32 %v1102, %v1103
    %v1105 = vmax.f32 %v1104, 0.0
    %v1106 = vmul.f32 %v355, %v883
    %v1107 = vmul.f32 %v360, %v888
    %v1108 = vadd.f32 %v1106, %v1107
    %v1109 = vrot.slane %v1108, 4
    %v1110 = vadd.f32 %v1108, %v1109
    %v1111 = vrot.slane %v1110, 2
    %v1112 = vadd.f32 %v1110, %v1111
    %v1113 = vrot.slane %v1112, 1
    %v1114 = vadd.f32 %v1112, %v1113
    %v1115 = vmax.f32 %v1114, 0.0
    %v1116 = vmul.f32 %v355, %v893
    %v1117 = vmul.f32 %v360, %v898
    %v1118 = vadd.f32 %v1116, %v1117
    %v1119 = vrot.slane %v1118, 4
    %v1120 = vadd.f32 %v1118, %v1119
    %v1121 = vrot.slane %v1120, 2
    %v1122 = vadd.f32 %v1120, %v1121
    %v1123 = vrot.slane %v1122, 1
    %v1124 = vadd.f32 %v1122, %v1123
    %v1125 = vmax.f32 %v1124, 0.0
    %v1126 = vmul.f32 %v355, %v903
    %v1127 = vmul.f32 %v360, %v908
    %v1128 = vadd.f32 %v1126, %v1127
    %v1129 = vrot.slane %v1128, 4
    %v1130 = vadd.f32 %v1128, %v1129
    %v1131 = vrot.slane %v1130, 2
    %v1132 = vadd.f32 %v1130, %v1131
    %v1133 = vrot.slane %v1132, 1
    %v1134 = vadd.f32 %v1132, %v1133
    %v1135 = vmax.f32 %v1134, 0.0
    %v1136 = vmul.f32 %v355, %v913
    %v1137 = vmul.f32 %v360, %v918
    %v1138 = vadd.f32 %v1136, %v1137
    %v1139 = vrot.slane %v1138, 4
    %v1140 = vadd.f32 %v1138, %v1139
    %v1141 = vrot.slane %v1140, 2
    %v1142 = vadd.f32 %v1140, %v1141
    %v1143 = vrot.slane %v1142, 1
    %v1144 = vadd.f32 %v1142, %v1143
    %v1145 = vmax.f32 %v1144, 0.0
    %v1146 = vmul.f32 %v365, %v873
    %v1147 = vmul.f32 %v370, %v878
    %v1148 = vadd.f32 %v1146, %v1147
    %v1149 = vrot.slane %v1148, 4
    %v1150 = vadd.f32 %v1148, %v1149
    %v1151 = vrot.slane %v1150, 2
    %v1152 = vadd.f32 %v1150, %v1151
    %v1153 = vrot.slane %v1152, 1
    %v1154 = vadd.f32 %v1152, %v1153
    %v1155 = vmax.f32 %v1154, 0.0
    %v1156 = vmul.f32 %v365, %v883
    %v1157 = vmul.f32 %v370, %v888
    %v1158 = vadd.f32 %v1156, %v1157
    %v1159 = vrot.slane %v1158, 4
    %v1160 = vadd.f32 %v1158, %v1159
    %v1161 = vrot.slane %v1160, 2
    %v1162 = vadd.f32 %v1160, %v1161
    %v1163 = vrot.slane %v1162, 1
    %v1164 = vadd.f32 %v1162, %v1163
    %v1165 = vmax.f32 %v1164, 0.0
    %v1166 = vmul.f32 %v365, %v893
    %v1167 = vmul.f32 %v370, %v898
    %v1168 = vadd.f32 %v1166, %v1167
    %v1169 = vrot.slane %v1168, 4
    %v1170 = vadd.f32 %v1168, %v1169
    %v1171 = vrot.slane %v1170, 2
    %v1172 = vadd.f32 %v1170, %v1171
    %v1173 = vrot.slane %v1172, 1
    %v1174 = vadd.f32 %v1172, %v1173
    %v1175 = vmax.f32 %v1174, 0.0
    %v1176 = vmul.f32 %v365, %v903
    %v1177 = vmul.f32 %v370, %v908
    %v1178 = vadd.f32 %v1176, %v1177
    %v1179 = vrot.slane %v1178, 4
    %v1180 = vadd.f32 %v1178, %v1179
    %v1181 = vrot.slane %v1180, 2
    %v1182 = vadd.f32 %v1180, %v1181
    %v1183 = vrot.slane %v1182, 1
    %v1184 = vadd.f32 %v1182, %v1183
    %v1185 = vmax.f32 %v1184, 0.0
    %v1186 = vmul.f32 %v365, %v913
    %v1187 = vmul.f32 %v370, %v918
    %v1188 = vadd.f32 %v1186, %v1187
    %v1189 = vrot.slane %v1188, 4
    %v1190 = vadd.f32 %v1188, %v1189
    %v1191 = vrot.slane %v1190, 2
    %v1192 = vadd.f32 %v1190, %v1191
    %v1193 = vrot.slane %v1192, 1
    %v1194 = vadd.f32 %v1192, %v1193
    %v1195 = vmax.f32 %v1194, 0.0
    %v1196 = vmul.f32 %v375, %v873
    %v1197 = vmul.f32 %v380, %v878
    %v1198 = vadd.f32 %v1196, %v1197
    %v1199 = vrot.slane %v1198, 4
    %v1200 = vadd.f32 %v1198, %v1199
    %v1201 = vrot.slane %v1200, 2
    %v1202 = vadd.f32 %v1200, %v1201
    %v1203 = vrot.slane %v1202, 1
    %v1204 = vadd.f32 %v1202, %v1203
    %v1205 = vmax.f32 %v1204, 0.0
    %v1206 = vmul.f32 %v375, %v883
    %v1207 = vmul.f32 %v380, %v888
    %v1208 = vadd.f32 %v1206, %v1207
    %v1209 = vrot.slane %v1208, 4
    %v1210 = vadd.f32 %v1208, %v1209
    %v1211 = vrot.slane %v1210, 2
    %v1212 = vadd.f32 %v1210, %v1211
    %v1213 = vrot.slane %v1212, 1
    %v1214 = vadd.f32 %v1212, %v1213
    %v1215 = vmax.f32 %v1214, 0.0
    %v1216 = vmul.f32 %v375, %v893
    %v1217 = vmul.f32 %v380, %v898
    %v1218 = vadd.f32 %v1216, %v1217
    %v1219 = vrot.slane %v1218, 4
    %v1220 = vadd.f32 %v1218, %v1219
    %v1221 = vrot.slane %v1220, 2
    %v1222 = vadd.f32 %v1220, %v1221
    %v1223 = vrot.slane %v1222, 1
    %v1224 = vadd.f32 %v1222, %v1223
    %v1225 = vmax.f32 %v1224, 0.0
    %v1226 = vmul.f32 %v375, %v903
    %v1227 = vmul.f32 %v380, %v908
    %v1228 = vadd.f32 %v1226, %v1227
    %v1229 = vrot.slane %v1228, 4
    %v1230 = vadd.f32 %v1228, %v1229
    %v1231 = vrot.slane %v1230, 2
    %v1232 = vadd.f32 %v1230, %v1231
    %v1233 = vrot.slane %v1232, 1
    %v1234 = vadd.f32 %v1232, %v1233
    %v1235 = vmax.f32 %v1234, 0.0
    %v1236 = vmul.f32 %v375, %v913
    %v1237 = vmul.f32 %v380, %v918
    %v1238 = vadd.f32 %v1236, %v1237
    %v1239 = vrot.slane %v1238, 4
    %v1240 = vadd.f32 %v1238, %v1239
    %v1241 = vrot.slane %v1240, 2
    %v1242 = vadd.f32 %v1240, %v1241
    %v1243 = vrot.slane %v1242, 1
    %v1244 = vadd.f32 %v1242, %v1243
    %v1245 = vmax.f32 %v1244, 0.0
    %v1246 = vmul.f32 %v385, %v873
    %v1247 = vmul.f32 %v390, %v878
    %v1248 = vadd.f32 %v1246, %v1247
    %v1249 = vrot.slane %v1248, 4
    %v1250 = vadd.f32 %v1248, %v1249
    %v1251 = vrot.slane %v1250, 2
    %v1252 = vadd.f32 %v1250, %v1251
    %v1253 = vrot.slane %v1252, 1
    %v1254 = vadd.f32 %v1252, %v1253
    %v1255 = vmax.f32 %v1254, 0.0
    %v1256 = vmul.f32 %v385, %v883
    %v1257 = vmul.f32 %v390, %v888
    %v1258 = vadd.f32 %v1256, %v1257
    %v1259 = vrot.slane %v1258, 4
    %v1260 = vadd.f32 %v1258, %v1259
    %v1261 = vrot.slane %v1260, 2
    %v1262 = vadd.f32 %v1260, %v1261
    %v1263 = vrot.slane %v1262, 1
    %v1264 = vadd.f32 %v1262, %v1263
    %v1265 = vmax.f32 %v1264, 0.0
    %v1266 = vmul.f32 %v385, %v893
    %v1267 = vmul.f32 %v390, %v898
    %v1268 = vadd.f32 %v1266, %v1267
    %v1269 = vrot.slane %v1268, 4
    %v1270 = vadd.f32 %v1268, %v1269
    %v1271 = vrot.slane %v1270, 2
    %v1272 = vadd.f32 %v1270, %v1271
    %v1273 = vrot.slane %v1272, 1
    %v1274 = vadd.f32 %v1272, %v1273
    %v1275 = vmax.f32 %v1274, 0.0
    %v1276 = vmul.f32 %v385, %v903
    %v1277 = vmul.f32 %v390, %v908
    %v1278 = vadd.f32 %v1276, %v1277
    %v1279 = vrot.slane %v1278, 4
    %v1280 = vadd.f32 %v1278, %v1279
    %v1281 = vrot.slane %v1280, 2
    %v1282 = vadd.f32 %v1280, %v1281
    %v1283 = vrot.slane %v1282, 1
    %v1284 = vadd.f32 %v1282, %v1283
    %v1285 = vmax.f32 %v1284, 0.0
    %v1286 = vmul.f32 %v385, %v913
    %v1287 = vmul.f32 %v390, %v918
    %v1288 = vadd.f32 %v1286, %v1287
    %v1289 = vrot.slane %v1288, 4
    %v1290 = vadd.f32 %v1288, %v1289
    %v1291 = vrot.slane %v1290, 2
    %v1292 = vadd.f32 %v1290, %v1291
    %v1293 = vrot.slane %v1292, 1
    %v1294 = vadd.f32 %v1292, %v1293
    %v1295 = vmax.f32 %v1294, 0.0
    %v1296 = vmul.f32 %v395, %v873
    %v1297 = vmul.f32 %v400, %v878
    %v1298 = vadd.f32 %v1296, %v1297
    %v1299 = vrot.slane %v1298, 4
    %v1300 = vadd.f32 %v1298, %v1299
    %v1301 = vrot.slane %v1300, 2
    %v1302 = vadd.f32 %v1300, %v1301
    %v1303 = vrot.slane %v1302, 1
    %v1304 = vadd.f32 %v1302, %v1303
    %v1305 = vmax.f32 %v1304, 0.0
    %v1306 = vmul.f32 %v395, %v883
    %v1307 = vmul.f32 %v400, %v888
    %v1308 = vadd.f32 %v1306, %v1307
    %v1309 = vrot.slane %v1308, 4
    %v1310 = vadd.f32 %v1308, %v1309
    %v1311 = vrot.slane %v1310, 2
    %v1312 = vadd.f32 %v1310, %v1311
    %v1313 = vrot.slane %v1312, 1
    %v1314 = vadd.f32 %v1312, %v1313
    %v1315 = vmax.f32 %v1314, 0.0
    %v1316 = vmul.f32 %v395, %v893
    %v1317 = vmul.f32 %v400, %v898
    %v1318 = vadd.f32 %v1316, %v1317
    %v1319 = vrot.slane %v1318, 4
    %v1320 = vadd.f32 %v1318, %v1319
    %v1321 = vrot.slane %v1320, 2
    %v1322 = vadd.f32 %v1320, %v1321
    %v1323 = vrot.slane %v1322, 1
    %v1324 = vadd.f32 %v1322, %v1323
    %v1325 = vmax.f32 %v1324, 0.0
    %v1326 = vmul.f32 %v395, %v903
    %v1327 = vmul.f32 %v400, %v908
    %v1328 = vadd.f32 %v1326, %v1327
    %v1329 = vrot.slane %v1328, 4
    %v1330 = vadd.f32 %v1328, %v1329
    %v1331 = vrot.slane %v1330, 2
    %v1332 = vadd.f32 %v1330, %v1331
    %v1333 = vrot.slane %v1332, 1
    %v1334 = vadd.f32 %v1332, %v1333
    %v1335 = vmax.f32 %v1334, 0.0
    %v1336 = vmul.f32 %v395, %v913
    %v1337 = vmul.f32 %v400, %v918
    %v1338 = vadd.f32 %v1336, %v1337
    %v1339 = vrot.slane %v1338, 4
    %v1340 = vadd.f32 %v1338, %v1339
    %v1341 = vrot.slane %v1340, 2
    %v1342 = vadd.f32 %v1340, %v1341
    %v1343 = vrot.slane %v1342, 1
    %v1344 = vadd.f32 %v1342, %v1343
    %v1345 = vmax.f32 %v1344, 0.0
    %v1346 = vmul.f32 %v1105, %v923
    %v1347 = vmul.f32 %v1105, %v928
    %v1348 = vmul.f32 %v1105, %v933
    %v1349 = vmul.f32 %v1105, %v938
    %v1350 = vmul.f32 %v1105, %v943
    %v1351 = vmul.f32 %v1105, %v948
    %v1352 = vmul.f32 %v1105, %v953
    %v1353 = vmul.f32 %v1115, %v958
    %v1354 = vmul.f32 %v1115, %v963
    %v1355 = vmul.f32 %v1115, %v968
    %v1356 = vmul.f32 %v1115, %v973
    %v1357 = vmul.f32 %v1115, %v978
    %v1358 = vmul.f32 %v1115, %v983
    %v1359 = vmul.f32 %v1115, %v988
    %v1360 = vadd.f32 %v1346, %v1353
    %v1361 = vadd.f32 %v1347, %v1354
    %v1362 = vadd.f32 %v1348, %v1355
    %v1363 = vadd.f32 %v1349, %v1356
    %v1364 = vadd.f32 %v1350, %v1357
    %v1365 = vadd.f32 %v1351, %v1358
    %v1366 = vadd.f32 %v1352, %v1359
    %v1367 = vmul.f32 %v1125, %v993
    %v1368 = vmul.f32 %v1125, %v998
    %v1369 = vmul.f32 %v1125, %v1003
    %v1370 = vmul.f32 %v1125, %v1008
    %v1371 = vmul.f32 %v1125, %v1013
    %v1372 = vmul.f32 %v1125, %v1018
    %v1373 = vmul.f32 %v1125, %v1023
    %v1374 = vadd.f32 %v1360, %v1367
    %v1375 = vadd.f32 %v1361, %v1368
    %v1376 = vadd.f32 %v1362, %v1369
    %v1377 = vadd.f32 %v1363, %v1370
    %v1378 = vadd.f32 %v1364, %v1371
    %v1379 = vadd.f32 %v1365, %v1372
    %v1380 = vadd.f32 %v1366, %v1373
    %v1381 = vmul.f32 %v1135, %v1028
    %v1382 = vmul.f32 %v1135, %v1033
    %v1383 = vmul.f32 %v1135, %v1038
    %v1384 = vmul.f32 %v1135, %v1043
    %v1385 = vmul.f32 %v1135, %v1048
    %v1386 = vmul.f32 %v1135, %v1053
    %v1387 = vmul.f32 %v1135, %v1058
    %v1388 = vadd.f32 %v1374, %v1381
    %v1389 = vadd.f32 %v1375, %v1382
    %v1390 = vadd.f32 %v1376, %v1383
    %v1391 = vadd.f32 %v1377, %v1384
    %v1392 = vadd.f32 %v1378, %v1385
    %v1393 = vadd.f32 %v1379, %v1386
    %v1394 = vadd.f32 %v1380, %v1387
    %v1395 = vmul.f32 %v1145, %v1063
    %v1396 = vmul.f32 %v1145, %v1068
    %v1397 = vmul.f32 %v1145, %v1073
    %v1398 = vmul.f32 %v1145, %v1078
    %v1399 = vmul.f32 %v1145, %v1083
    %v1400 = vmul.f32 %v1145, %v1088
    %v1401 = vmul.f32 %v1145, %v1093
    %v1402 = vadd.f32 %v1388, %v1395
    %v1403 = vadd.f32 %v1389, %v1396
    %v1404 = vadd.f32 %v1390, %v1397
    %v1405 = vadd.f32 %v1391, %v1398
    %v1406 = vadd.f32 %v1392, %v1399
    %v1407 = vadd.f32 %v1393, %v1400
    %v1408 = vadd.f32 %v1394, %v1401
    %v1409 = vmul.f32 %v1155, %v923
    %v1410 = vmul.f32 %v1155, %v928
    %v1411 = vmul.f32 %v1155, %v933
    %v1412 = vmul.f32 %v1155, %v938
    %v1413 = vmul.f32 %v1155, %v943
    %v1414 = vmul.f32 %v1155, %v948
    %v1415 = vmul.f32 %v1155, %v953
    %v1416 = vmul.f32 %v1165, %v958
    %v1417 = vmul.f32 %v1165, %v963
    %v1418 = vmul.f32 %v1165, %v968
    %v1419 = vmul.f32 %v1165, %v973
    %v1420 = vmul.f32 %v1165, %v978
    %v1421 = vmul.f32 %v1165, %v983
    %v1422 = vmul.f32 %v1165, %v988
    %v1423 = vadd.f32 %v1409, %v1416
    %v1424 = vadd.f32 %v1410, %v1417
    %v1425 = vadd.f32 %v1411, %v1418
    %v1426 = vadd.f32 %v1412, %v1419
    %v1427 = vadd.f32 %v1413, %v1420
    %v1428 = vadd.f32 %v1414, %v1421
    %v1429 = vadd.f32 %v1415, %v1422
    %v1430 = vmul.f32 %v1175, %v993
    %v1431 = vmul.f32 %v1175, %v998
    %v1432 = vmul.f32 %v1175, %v1003
    %v1433 = vmul.f32 %v1175, %v1008
    %v1434 = vmul.f32 %v1175, %v1013
    %v1435 = vmul.f32 %v1175, %v1018
    %v1436 = vmul.f32 %v1175, %v1023
    %v1437 = vadd.f32 %v1423, %v1430
    %v1438 = vadd.f32 %v1424, %v1431
    %v1439 = vadd.f32 %v1425, %v1432
    %v1440 = vadd.f32 %v1426, %v1433
    %v1441 = vadd.f32 %v1427, %v1434
    %v1442 = vadd.f32 %v1428, %v1435
    %v1443 = vadd.f32 %v1429, %v1436
    %v1444 = vmul.f32 %v1185, %v1028
    %v1445 = vmul.f32 %v1185, %v1033
    %v1446 = vmul.f32 %v1185, %v1038
    %v1447 = vmul.f32 %v1185, %v1043
    %v1448 = vmul.f32 %v1185, %v1048
    %v1449 = vmul.f32 %v1185, %v1053
    %v1450 = vmul.f32 %v1185, %v1058
    %v1451 = vadd.f32 %v1437, %v1444
    %v1452 = vadd.f32 %v1438, %v1445
    %v1453 = vadd.f32 %v1439, %v1446
    %v1454 = vadd.f32 %v1440, %v1447
    %v1455 = vadd.f32 %v1441, %v1448
    %v1456 = vadd.f32 %v1442, %v1449
    %v1457 = vadd.f32 %v1443, %v1450
    %v1458 = vmul.f32 %v1195, %v1063
    %v1459 = vmul.f32 %v1195, %v1068
    %v1460 = vmul.f32 %v1195, %v1073
    %v1461 = vmul.f32 %v1195, %v1078
    %v1462 = vmul.f32 %v1195, %v1083
    %v1463 = vmul.f32 %v1195, %v1088
    %v1464 = vmul.f32 %v1195, %v1093
    %v1465 = vadd.f32 %v1451, %v1458
    %v1466 = vadd.f32 %v1452, %v1459
    %v1467 = vadd.f32 %v1453, %v1460
    %v1468 = vadd.f32 %v1454, %v1461
    %v1469 = vadd.f32 %v1455, %v1462
    %v1470 = vadd.f32 %v1456, %v1463
    %v1471 = vadd.f32 %v1457, %v1464
    %v1472 = vmul.f32 %v1205, %v923
    %v1473 = vmul.f32 %v1205, %v928
    %v1474 = vmul.f32 %v1205, %v933
    %v1475 = vmul.f32 %v1205, %v938
    %v1476 = vmul.f32 %v1205, %v943
    %v1477 = vmul.f32 %v1205, %v948
    %v1478 = vmul.f32 %v1205, %v953
    %v1479 = vmul.f32 %v1215, %v958
    %v1480 = vmul.f32 %v1215, %v963
    %v1481 = vmul.f32 %v1215, %v968
    %v1482 = vmul.f32 %v1215, %v973
    %v1483 = vmul.f32 %v1215, %v978
    %v1484 = vmul.f32 %v1215, %v983
    %v1485 = vmul.f32 %v1215, %v988
    %v1486 = vadd.f32 %v1472, %v1479
    %v1487 = vadd.f32 %v1473, %v1480
    %v1488 = vadd.f32 %v1474, %v1481
    %v1489 = vadd.f32 %v1475, %v1482
    %v1490 = vadd.f32 %v1476, %v1483
    %v1491 = vadd.f32 %v1477, %v1484
    %v1492 = vadd.f32 %v1478, %v1485
    %v1493 = vmul.f32 %v1225, %v993
    %v1494 = vmul.f32 %v1225, %v998
    %v1495 = vmul.f32 %v1225, %v1003
    %v1496 = vmul.f32 %v1225, %v1008
    %v1497 = vmul.f32 %v1225, %v1013
    %v1498 = vmul.f32 %v1225, %v1018
    %v1499 = vmul.f32 %v1225, %v1023
    %v1500 = vadd.f32 %v1486, %v1493
    %v1501 = vadd.f32 %v1487, %v1494
    %v1502 = vadd.f32 %v1488, %v1495
    %v1503 = vadd.f32 %v1489, %v1496
    %v1504 = vadd.f32 %v1490, %v1497
    %v1505 = vadd.f32 %v1491, %v1498
    %v1506 = vadd.f32 %v1492, %v1499
    %v1507 = vmul.f32 %v1235, %v1028
    %v1508 = vmul.f32 %v1235, %v1033
    %v1509 = vmul.f32 %v1235, %v1038
    %v1510 = vmul.f32 %v1235, %v1043
    %v1511 = vmul.f32 %v1235, %v1048
    %v1512 = vmul.f32 %v1235, %v1053
    %v1513 = vmul.f32 %v1235, %v1058
    %v1514 = vadd.f32 %v1500, %v1507
    %v1515 = vadd.f32 %v1501, %v1508
    %v1516 = vadd.f32 %v1502, %v1509
    %v1517 = vadd.f32 %v1503, %v1510
    %v1518 = vadd.f32 %v1504, %v1511
    %v1519 = vadd.f32 %v1505, %v1512
    %v1520 = vadd.f32 %v1506, %v1513
    %v1521 = vmul.f32 %v1245, %v1063
    %v1522 = vmul.f32 %v1245, %v1068
    %v1523 = vmul.f32 %v1245, %v1073
    %v1524 = vmul.f32 %v1245, %v1078
    %v1525 = vmul.f32 %v1245, %v1083
    %v1526 = vmul.f32 %v1245, %v1088
    %v1527 = vmul.f32 %v1245, %v1093
    %v1528 = vadd.f32 %v1514, %v1521
    %v1529 = vadd.f32 %v1515, %v1522
    %v1530 = vadd.f32 %v1516, %v1523
    %v1531 = vadd.f32 %v1517, %v1524
    %v1532 = vadd.f32 %v1518, %v1525
    %v1533 = vadd.f32 %v1519, %v1526
    %v1534 = vadd.f32 %v1520, %v1527
    %v1535 = vmul.f32 %v1255, %v923
    %v1536 = vmul.f32 %v1255, %v928
    %v1537 = vmul.f32 %v1255, %v933
    %v1538 = vmul.f32 %v1255, %v938
    %v1539 = vmul.f32 %v1255, %v943
    %v1540 = vmul.f32 %v1255, %v948
    %v1541 = vmul.f32 %v1255, %v953
    %v1542 = vmul.f32 %v1265, %v958
    %v1543 = vmul.f32 %v1265, %v963
    %v1544 = vmul.f32 %v1265, %v968
    %v1545 = vmul.f32 %v1265, %v973
    %v1546 = vmul.f32 %v1265, %v978
    %v1547 = vmul.f32 %v1265, %v983
    %v1548 = vmul.f32 %v1265, %v988
    %v1549 = vadd.f32 %v1535, %v1542
    %v1550 = vadd.f32 %v1536, %v1543
    %v1551 = vadd.f32 %v1537, %v1544
    %v1552 = vadd.f32 %v1538, %v1545
    %v1553 = vadd.f32 %v1539, %v1546
    %v1554 = vadd.f32 %v1540, %v1547
    %v1555 = vadd.f32 %v1541, %v1548
    %v1556 = vmul.f32 %v1275, %v993
    %v1557 = vmul.f32 %v1275, %v998
    %v1558 = vmul.f32 %v1275, %v1003
    %v1559 = vmul.f32 %v1275, %v1008
    %v1560 = vmul.f32 %v1275, %v1013
    %v1561 = vmul.f32 %v1275, %v1018
    %v1562 = vmul.f32 %v1275, %v1023
    %v1563 = vadd.f32 %v1549, %v1556
    %v1564 = vadd.f32 %v1550, %v1557
    %v1565 = vadd.f32 %v1551, %v1558
    %v1566 = vadd.f32 %v1552, %v1559
    %v1567 = vadd.f32 %v1553, %v1560
    %v1568 = vadd.f32 %v1554, %v1561
    %v1569 = vadd.f32 %v1555, %v1562
    %v1570 = vmul.f32 %v1285, %v1028
    %v1571 = vmul.f32 %v1285, %v1033
    %v1572 = vmul.f32 %v1285, %v1038
    %v1573 = vmul.f32 %v1285, %v1043
    %v1574 = vmul.f32 %v1285, %v1048
    %v1575 = vmul.f32 %v1285, %v1053
    %v1576 = vmul.f32 %v1285, %v1058
    %v1577 = vadd.f32 %v1563, %v1570
    %v1578 = vadd.f32 %v1564, %v1571
    %v1579 = vadd.f32 %v1565, %v1572
    %v1580 = vadd.f32 %v1566, %v1573
    %v1581 = vadd.f32 %v1567, %v1574
    %v1582 = vadd.f32 %v1568, %v1575
    %v1583 = vadd.f32 %v1569, %v1576
    %v1584 = vmul.f32 %v1295, %v1063
    %v1585 = vmul.f32 %v1295, %v1068
    %v1586 = vmul.f32 %v1295, %v1073
    %v1587 = vmul.f32 %v1295, %v1078
    %v1588 = vmul.f32 %v1295, %v1083
    %v1589 = vmul.f32 %v1295, %v1088
    %v1590 = vmul.f32 %v1295, %v1093
    %v1591 = vadd.f32 %v1577, %v1584
    %v1592 = vadd.f32 %v1578, %v1585
    %v1593 = vadd.f32 %v1579, %v1586
    %v1594 = vadd.f32 %v1580, %v1587
    %v1595 = vadd.f32 %v1581, %v1588
    %v1596 = vadd.f32 %v1582, %v1589
    %v1597 = vadd.f32 %v1583, %v1590
    %v1598 = vmul.f32 %v1305, %v923
    %v1599 = vmul.f32 %v1305, %v928
    %v1600 = vmul.f32 %v1305, %v933
    %v1601 = vmul.f32 %v1305, %v938
    %v1602 = vmul.f32 %v1305, %v943
    %v1603 = vmul.f32 %v1305, %v948
    %v1604 = vmul.f32 %v1305, %v953
    %v1605 = vmul.f32 %v1315, %v958
    %v1606 = vmul.f32 %v1315, %v963
    %v1607 = vmul.f32 %v1315, %v968
    %v1608 = vmul.f32 %v1315, %v973
    %v1609 = vmul.f32 %v1315, %v978
    %v1610 = vmul.f32 %v1315, %v983
    %v1611 = vmul.f32 %v1315, %v988
    %v1612 = vadd.f32 %v1598, %v1605
    %v1613 = vadd.f32 %v1599, %v1606
    %v1614 = vadd.f32 %v1600, %v1607
    %v1615 = vadd.f32 %v1601, %v1608
    %v1616 = vadd.f32 %v1602, %v1609
    %v1617 = vadd.f32 %v1603, %v1610
    %v1618 = vadd.f32 %v1604, %v1611
    %v1619 = vmul.f32 %v1325, %v993
    %v1620 = vmul.f32 %v1325, %v998
    %v1621 = vmul.f32 %v1325, %v1003
    %v1622 = vmul.f32 %v1325, %v1008
    %v1623 = vmul.f32 %v1325, %v1013
    %v1624 = vmul.f32 %v1325, %v1018
    %v1625 = vmul.f32 %v1325, %v1023
    %v1626 = vadd.f32 %v1612, %v1619
    %v1627 = vadd.f32 %v1613, %v1620
    %v1628 = vadd.f32 %v1614, %v1621
    %v1629 = vadd.f32 %v1615, %v1622
    %v1630 = vadd.f32 %v1616, %v1623
    %v1631 = vadd.f32 %v1617, %v1624
    %v1632 = vadd.f32 %v1618, %v1625
    %v1633 = vmul.f32 %v1335, %v1028
    %v1634 = vmul.f32 %v1335, %v1033
    %v1635 = vmul.f32 %v1335, %v1038
    %v1636 = vmul.f32 %v1335, %v1043
    %v1637 = vmul.f32 %v1335, %v1048
    %v1638 = vmul.f32 %v1335, %v1053
    %v1639 = vmul.f32 %v1335, %v1058
    %v1640 = vadd.f32 %v1626, %v1633
    %v1641 = vadd.f32 %v1627, %v1634
    %v1642 = vadd.f32 %v1628, %v1635
    %v1643 = vadd.f32 %v1629, %v1636
    %v1644 = vadd.f32 %v1630, %v1637
    %v1645 = vadd.f32 %v1631, %v1638
    %v1646 = vadd.f32 %v1632, %v1639
    %v1647 = vmul.f32 %v1345, %v1063
    %v1648 = vmul.f32 %v1345, %v1068
    %v1649 = vmul.f32 %v1345, %v1073
    %v1650 = vmul.f32 %v1345, %v1078
    %v1651 = vmul.f32 %v1345, %v1083
    %v1652 = vmul.f32 %v1345, %v1088
    %v1653 = vmul.f32 %v1345, %v1093
    %v1654 = vadd.f32 %v1640, %v1647
    %v1655 = vadd.f32 %v1641, %v1648
    %v1656 = vadd.f32 %v1642, %v1649
    %v1657 = vadd.f32 %v1643, %v1650
    %v1658 = vadd.f32 %v1644, %v1651
    %v1659 = vadd.f32 %v1645, %v1652
    %v1660 = vadd.f32 %v1646, %v1653
    %v1661 = vadd.f32 %v405, %v1402
    %v1662 = vadd.f32 %v410, %v1403
    %v1663 = vadd.f32 %v415, %v1404
    %v1664 = vadd.f32 %v420, %v1405
    %v1665 = vadd.f32 %v425, %v1406
    %v1666 = vadd.f32 %v430, %v1407
    %v1667 = vadd.f32 %v435, %v1408
    %v1668 = vadd.f32 %v440, %v1465
    %v1669 = vadd.f32 %v445, %v1466
    %v1670 = vadd.f32 %v450, %v1467
    %v1671 = vadd.f32 %v455, %v1468
    %v1672 = vadd.f32 %v460, %v1469
    %v1673 = vadd.f32 %v465, %v1470
    %v1674 = vadd.f32 %v470, %v1471
    %v1675 = vadd.f32 %v475, %v1528
    %v1676 = vadd.f32 %v480, %v1529
    %v1677 = vadd.f32 %v485, %v1530
    %v1678 = vadd.f32 %v490, %v1531
    %v1679 = vadd.f32 %v495, %v1532
    %v1680 = vadd.f32 %v500, %v1533
    %v1681 = vadd.f32 %v505, %v1534
    %v1682 = vadd.f32 %v510, %v1591
    %v1683 = vadd.f32 %v515, %v1592
    %v1684 = vadd.f32 %v520, %v1593
    %v1685 = vadd.f32 %v525, %v1594
    %v1686 = vadd.f32 %v530, %v1595
    %v1687 = vadd.f32 %v535, %v1596
    %v1688 = vadd.f32 %v540, %v1597
    %v1689 = vadd.f32 %v545, %v1654
    %v1690 = vadd.f32 %v550, %v1655
    %v1691 = vadd.f32 %v555, %v1656
    %v1692 = vadd.f32 %v560, %v1657
    %v1693 = vadd.f32 %v565, %v1658
    %v1694 = vadd.f32 %v570, %v1659
    %v1695 = vadd.f32 %v575, %v1660
    %v1696 = vmax.f32 %v1661, 0.0
    %v1697 = vmax.f32 %v1662, 0.0
    %v1698 = vmax.f32 %v1663, 0.0
    %v1699 = vmax.f32 %v1664, 0.0
    %v1700 = vmax.f32 %v1665, 0.0
    %v1701 = vmax.f32 %v1666, 0.0
    %v1702 = vmax.f32 %v1667, 0.0
    %v1703 = vmax.f32 %v1668, 0.0
    %v1704 = vmax.f32 %v1669, 0.0
    %v1705 = vmax.f32 %v1670, 0.0
    %v1706 = vmax.f32 %v1671, 0.0
    %v1707 = vmax.f32 %v1672, 0.0
    %v1708 = vmax.f32 %v1673, 0.0
    %v1709 = vmax.f32 %v1674, 0.0
    %v1710 = vmax.f32 %v1675, 0.0
    %v1711 = vmax.f32 %v1676, 0.0
    %v1712 = vmax.f32 %v1677, 0.0
    %v1713 = vmax.f32 %v1678, 0.0
    %v1714 = vmax.f32 %v1679, 0.0
    %v1715 = vmax.f32 %v1680, 0.0
    %v1716 = vmax.f32 %v1681, 0.0
    %v1717 = vmax.f32 %v1682, 0.0
    %v1718 = vmax.f32 %v1683, 0.0
    %v1719 = vmax.f32 %v1684, 0.0
    %v1720 = vmax.f32 %v1685, 0.0
    %v1721 = vmax.f32 %v1686, 0.0
    %v1722 = vmax.f32 %v1687, 0.0
    %v1723 = vmax.f32 %v1688, 0.0
    %v1724 = vmax.f32 %v1689, 0.0
    %v1725 = vmax.f32 %v1690, 0.0
    %v1726 = vmax.f32 %v1691, 0.0
    %v1727 = vmax.f32 %v1692, 0.0
    %v1728 = vmax.f32 %v1693, 0.0
    %v1729 = vmax.f32 %v1694, 0.0
    %v1730 = vmax.f32 %v1695, 0.0
    %v1731 = vmul.f32 %v1105, %v405
    %v1732 = vmul.f32 %v1105, %v410
    %v1733 = vmul.f32 %v1105, %v415
    %v1734 = vmul.f32 %v1105, %v420
    %v1735 = vmul.f32 %v1105, %v425
    %v1736 = vmul.f32 %v1105, %v430
    %v1737 = vmul.f32 %v1105, %v435
    %v1738 = vmul.f32 %v1155, %v440
    %v1739 = vmul.f32 %v1155, %v445
    %v1740 = vmul.f32 %v1155, %v450
    %v1741 = vmul.f32 %v1155, %v455
    %v1742 = vmul.f32 %v1155, %v460
    %v1743 = vmul.f32 %v1155, %v465
    %v1744 = vmul.f32 %v1155, %v470
    %v1745 = vadd.f32 %v1731, %v1738
    %v1746 = vadd.f32 %v1732, %v1739
    %v1747 = vadd.f32 %v1733, %v1740
    %v1748 = vadd.f32 %v1734, %v1741
    %v1749 = vadd.f32 %v1735, %v1742
    %v1750 = vadd.f32 %v1736, %v1743
    %v1751 = vadd.f32 %v1737, %v1744
    %v1752 = vmul.f32 %v1205, %v475
    %v1753 = vmul.f32 %v1205, %v480
    %v1754 = vmul.f32 %v1205, %v485
    %v1755 = vmul.f32 %v1205, %v490
    %v1756 = vmul.f32 %v1205, %v495
    %v1757 = vmul.f32 %v1205, %v500
    %v1758 = vmul.f32 %v1205, %v505
    %v1759 = vadd.f32 %v1745, %v1752
    %v1760 = vadd.f32 %v1746, %v1753
    %v1761 = vadd.f32 %v1747, %v1754
    %v1762 = vadd.f32 %v1748, %v1755
    %v1763 = vadd.f32 %v1749, %v1756
    %v1764 = vadd.f32 %v1750, %v1757
    %v1765 = vadd.f32 %v1751, %v1758
    %v1766 = vmul.f32 %v1255, %v510
    %v1767 = vmul.f32 %v1255, %v515
    %v1768 = vmul.f32 %v1255, %v520
    %v1769 = vmul.f32 %v1255, %v525
    %v1770 = vmul.f32 %v1255, %v530
    %v1771 = vmul.f32 %v1255, %v535
    %v1772 = vmul.f32 %v1255, %v540
    %v1773 = vadd.f32 %v1759, %v1766
    %v1774 = vadd.f32 %v1760, %v1767
    %v1775 = vadd.f32 %v1761, %v1768
    %v1776 = vadd.f32 %v1762, %v1769
    %v1777 = vadd.f32 %v1763, %v1770
    %v1778 = vadd.f32 %v1764, %v1771
    %v1779 = vadd.f32 %v1765, %v1772
    %v1780 = vmul.f32 %v1305, %v545
    %v1781 = vmul.f32 %v1305, %v550
    %v1782 = vmul.f32 %v1305, %v555
    %v1783 = vmul.f32 %v1305, %v560
    %v1784 = vmul.f32 %v1305, %v565
    %v1785 = vmul.f32 %v1305, %v570
    %v1786 = vmul.f32 %v1305, %v575
    %v1787 = vadd.f32 %v1773, %v1780
    %v1788 = vadd.f32 %v1774, %v1781
    %v1789 = vadd.f32 %v1775, %v1782
    %v1790 = vadd.f32 %v1776, %v1783
    %v1791 = vadd.f32 %v1777, %v1784
    %v1792 = vadd.f32 %v1778, %v1785
    %v1793 = vadd.f32 %v1779, %v1786
    %v1794 = vmul.f32 %v1115, %v405
    %v1795 = vmul.f32 %v1115, %v410
    %v1796 = vmul.f32 %v1115, %v415
    %v1797 = vmul.f32 %v1115, %v420
    %v1798 = vmul.f32 %v1115, %v425
    %v1799 = vmul.f32 %v1115, %v430
    %v1800 = vmul.f32 %v1115, %v435
    %v1801 = vmul.f32 %v1165, %v440
    %v1802 = vmul.f32 %v1165, %v445
    %v1803 = vmul.f32 %v1165, %v450
    %v1804 = vmul.f32 %v1165, %v455
    %v1805 = vmul.f32 %v1165, %v460
    %v1806 = vmul.f32 %v1165, %v465
    %v1807 = vmul.f32 %v1165, %v470
    %v1808 = vadd.f32 %v1794, %v1801
    %v1809 = vadd.f32 %v1795, %v1802
    %v1810 = vadd.f32 %v1796, %v1803
    %v1811 = vadd.f32 %v1797, %v1804
    %v1812 = vadd.f32 %v1798, %v1805
    %v1813 = vadd.f32 %v1799, %v1806
    %v1814 = vadd.f32 %v1800, %v1807
    %v1815 = vmul.f32 %v1215, %v475
    %v1816 = vmul.f32 %v1215, %v480
    %v1817 = vmul.f32 %v1215, %v485
    %v1818 = vmul.f32 %v1215, %v490
    %v1819 = vmul.f32 %v1215, %v495
    %v1820 = vmul.f32 %v1215, %v500
    %v1821 = vmul.f32 %v1215, %v505
    %v1822 = vadd.f32 %v1808, %v1815
    %v1823 = vadd.f32 %v1809, %v1816
    %v1824 = vadd.f32 %v1810, %v1817
    %v1825 = vadd.f32 %v1811, %v1818
    %v1826 = vadd.f32 %v1812, %v1819
    %v1827 = vadd.f32 %v1813, %v1820
    %v1828 = vadd.f32 %v1814, %v1821
    %v1829 = vmul.f32 %v1265, %v510
    %v1830 = vmul.f32 %v1265, %v515
    %v1831 = vmul.f32 %v1265, %v520
    %v1832 = vmul.f32 %v1265, %v525
    %v1833 = vmul.f32 %v1265, %v530
    %v1834 = vmul.f32 %v1265, %v535
    %v1835 = vmul.f32 %v1265, %v540
    %v1836 = vadd.f32 %v1822, %v1829
    %v1837 = vadd.f32 %v1823, %v1830
    %v1838 = vadd.f32 %v1824, %v1831
    %v1839 = vadd.f32 %v1825, %v1832
    %v1840 = vadd.f32 %v1826, %v1833
    %v1841 = vadd.f32 %v1827, %v1834
    %v1842 = vadd.f32 %v1828, %v1835
    %v1843 = vmul.f32 %v1315, %v545
    %v1844 = vmul.f32 %v1315, %v550
    %v1845 = vmul.f32 %v1315, %v555
    %v1846 = vmul.f32 %v1315, %v560
    %v1847 = vmul.f32 %v1315, %v565
    %v1848 = vmul.f32 %v1315, %v570
    %v1849 = vmul.f32 %v1315, %v575
    %v1850 = vadd.f32 %v1836, %v1843
    %v1851 = vadd.f32 %v1837, %v1844
    %v1852 = vadd.f32 %v1838, %v1845
    %v1853 = vadd.f32 %v1839, %v1846
    %v1854 = vadd.f32 %v1840, %v1847
    %v1855 = vadd.f32 %v1841, %v1848
    %v1856 = vadd.f32 %v1842, %v1849
    %v1857 = vmul.f32 %v1125, %v405
    %v1858 = vmul.f32 %v1125, %v410
    %v1859 = vmul.f32 %v1125, %v415
    %v1860 = vmul.f32 %v1125, %v420
    %v1861 = vmul.f32 %v1125, %v425
    %v1862 = vmul.f32 %v1125, %v430
    %v1863 = vmul.f32 %v1125, %v435
    %v1864 = vmul.f32 %v1175, %v440
    %v1865 = vmul.f32 %v1175, %v445
    %v1866 = vmul.f32 %v1175, %v450
    %v1867 = vmul.f32 %v1175, %v455
    %v1868 = vmul.f32 %v1175, %v460
    %v1869 = vmul.f32 %v1175, %v465
    %v1870 = vmul.f32 %v1175, %v470
    %v1871 = vadd.f32 %v1857, %v1864
    %v1872 = vadd.f32 %v1858, %v1865
    %v1873 = vadd.f32 %v1859, %v1866
    %v1874 = vadd.f32 %v1860, %v1867
    %v1875 = vadd.f32 %v1861, %v1868
    %v1876 = vadd.f32 %v1862, %v1869
    %v1877 = vadd.f32 %v1863, %v1870
    %v1878 = vmul.f32 %v1225, %v475
    %v1879 = vmul.f32 %v1225, %v480
    %v1880 = vmul.f32 %v1225, %v485
    %v1881 = vmul.f32 %v1225, %v490
    %v1882 = vmul.f32 %v1225, %v495
    %v1883 = vmul.f32 %v1225, %v500
    %v1884 = vmul.f32 %v1225, %v505
    %v1885 = vadd.f32 %v1871, %v1878
    %v1886 = vadd.f32 %v1872, %v1879
    %v1887 = vadd.f32 %v1873, %v1880
    %v1888 = vadd.f32 %v1874, %v1881
    %v1889 = vadd.f32 %v1875, %v1882
    %v1890 = vadd.f32 %v1876, %v1883
    %v1891 = vadd.f32 %v1877, %v1884
    %v1892 = vmul.f32 %v1275, %v510
    %v1893 = vmul.f32 %v1275, %v515
    %v1894 = vmul.f32 %v1275, %v520
    %v1895 = vmul.f32 %v1275, %v525
    %v1896 = vmul.f32 %v1275, %v530
    %v1897 = vmul.f32 %v1275, %v535
    %v1898 = vmul.f32 %v1275, %v540
    %v1899 = vadd.f32 %v1885, %v1892
    %v1900 = vadd.f32 %v1886, %v1893
    %v1901 = vadd.f32 %v1887, %v1894
    %v1902 = vadd.f32 %v1888, %v1895
    %v1903 = vadd.f32 %v1889, %v1896
    %v1904 = vadd.f32 %v1890, %v1897
    %v1905 = vadd.f32 %v1891, %v1898
    %v1906 = vmul.f32 %v1325, %v545
    %v1907 = vmul.f32 %v1325, %v550
    %v1908 = vmul.f32 %v1325, %v555
    %v1909 = vmul.f32 %v1325, %v560
    %v1910 = vmul.f32 %v1325, %v565
    %v1911 = vmul.f32 %v1325, %v570
    %v1912 = vmul.f32 %v1325, %v575
    %v1913 = vadd.f32 %v1899, %v1906
    %v1914 = vadd.f32 %v1900, %v1907
    %v1915 = vadd.f32 %v1901, %v1908
    %v1916 = vadd.f32 %v1902, %v1909
    %v1917 = vadd.f32 %v1903, %v1910
    %v1918 = vadd.f32 %v1904, %v1911
    %v1919 = vadd.f32 %v1905, %v1912
    %v1920 = vmul.f32 %v1135, %v405
    %v1921 = vmul.f32 %v1135, %v410
    %v1922 = vmul.f32 %v1135, %v415
    %v1923 = vmul.f32 %v1135, %v420
    %v1924 = vmul.f32 %v1135, %v425
    %v1925 = vmul.f32 %v1135, %v430
    %v1926 = vmul.f32 %v1135, %v435
    %v1927 = vmul.f32 %v1185, %v440
    %v1928 = vmul.f32 %v1185, %v445
    %v1929 = vmul.f32 %v1185, %v450
    %v1930 = vmul.f32 %v1185, %v455
    %v1931 = vmul.f32 %v1185, %v460
    %v1932 = vmul.f32 %v1185, %v465
    %v1933 = vmul.f32 %v1185, %v470
    %v1934 = vadd.f32 %v1920, %v1927
    %v1935 = vadd.f32 %v1921, %v1928
    %v1936 = vadd.f32 %v1922, %v1929
    %v1937 = vadd.f32 %v1923, %v1930
    %v1938 = vadd.f32 %v1924, %v1931
    %v1939 = vadd.f32 %v1925, %v1932
    %v1940 = vadd.f32 %v1926, %v1933
    %v1941 = vmul.f32 %v1235, %v475
    %v1942 = vmul.f32 %v1235, %v480
    %v1943 = vmul.f32 %v1235, %v485
    %v1944 = vmul.f32 %v1235, %v490
    %v1945 = vmul.f32 %v1235, %v495
    %v1946 = vmul.f32 %v1235, %v500
    %v1947 = vmul.f32 %v1235, %v505
    %v1948 = vadd.f32 %v1934, %v1941
    %v1949 = vadd.f32 %v1935, %v1942
    %v1950 = vadd.f32 %v1936, %v1943
    %v1951 = vadd.f32 %v1937, %v1944
    %v1952 = vadd.f32 %v1938, %v1945
    %v1953 = vadd.f32 %v1939, %v1946
    %v1954 = vadd.f32 %v1940, %v1947
    %v1955 = vmul.f32 %v1285, %v510
    %v1956 = vmul.f32 %v1285, %v515
    %v1957 = vmul.f32 %v1285, %v520
    %v1958 = vmul.f32 %v1285, %v525
    %v1959 = vmul.f32 %v1285, %v530
    %v1960 = vmul.f32 %v1285, %v535
    %v1961 = vmul.f32 %v1285, %v540
    %v1962 = vadd.f32 %v1948, %v1955
    %v1963 = vadd.f32 %v1949, %v1956
    %v1964 = vadd.f32 %v1950, %v1957
    %v1965 = vadd.f32 %v1951, %v1958
    %v1966 = vadd.f32 %v1952, %v1959
    %v1967 = vadd.f32 %v1953, %v1960
    %v1968 = vadd.f32 %v1954, %v1961
    %v1969 = vmul.f32 %v1335, %v545
    %v1970 = vmul.f32 %v1335, %v550
    %v1971 = vmul.f32 %v1335, %v555
    %v1972 = vmul.f32 %v1335, %v560
    %v1973 = vmul.f32 %v1335, %v565
    %v1974 = vmul.f32 %v1335, %v570
    %v1975 = vmul.f32 %v1335, %v575
    %v1976 = vadd.f32 %v1962, %v1969
    %v1977 = vadd.f32 %v1963, %v1970
    %v1978 = vadd.f32 %v1964, %v1971
    %v1979 = vadd.f32 %v1965, %v1972
    %v1980 = vadd.f32 %v1966, %v1973
    %v1981 = vadd.f32 %v1967, %v1974
    %v1982 = vadd.f32 %v1968, %v1975
    %v1983 = vmul.f32 %v1145, %v405
    %v1984 = vmul.f32 %v1145, %v410
    %v1985 = vmul.f32 %v1145, %v415
    %v1986 = vmul.f32 %v1145, %v420
    %v1987 = vmul.f32 %v1145, %v425
    %v1988 = vmul.f32 %v1145, %v430
    %v1989 = vmul.f32 %v1145, %v435
    %v1990 = vmul.f32 %v1195, %v440
    %v1991 = vmul.f32 %v1195, %v445
    %v1992 = vmul.f32 %v1195, %v450
    %v1993 = vmul.f32 %v1195, %v455
    %v1994 = vmul.f32 %v1195, %v460
    %v1995 = vmul.f32 %v1195, %v465
    %v1996 = vmul.f32 %v1195, %v470
    %v1997 = vadd.f32 %v1983, %v1990
    %v1998 = vadd.f32 %v1984, %v1991
    %v1999 = vadd.f32 %v1985, %v1992
    %v2000 = vadd.f32 %v1986, %v1993
    %v2001 = vadd.f32 %v1987, %v1994
    %v2002 = vadd.f32 %v1988, %v1995
    %v2003 = vadd.f32 %v1989, %v1996
    %v2004 = vmul.f32 %v1245, %v475
    %v2005 = vmul.f32 %v1245, %v480
    %v2006 = vmul.f32 %v1245, %v485
    %v2007 = vmul.f32 %v1245, %v490
    %v2008 = vmul.f32 %v1245, %v495
    %v2009 = vmul.f32 %v1245, %v500
    %v2010 = vmul.f32 %v1245, %v505
    %v2011 = vadd.f32 %v1997, %v2004
    %v2012 = vadd.f32 %v1998, %v2005
    %v2013 = vadd.f32 %v1999, %v2006
    %v2014 = vadd.f32 %v2000, %v2007
    %v2015 = vadd.f32 %v2001, %v2008
    %v2016 = vadd.f32 %v2002, %v2009
    %v2017 = vadd.f32 %v2003, %v2010
    %v2018 = vmul.f32 %v1295, %v510
    %v2019 = vmul.f32 %v1295, %v515
    %v2020 = vmul.f32 %v1295, %v520
    %v2021 = vmul.f32 %v1295, %v525
    %v2022 = vmul.f32 %v1295, %v530
    %v2023 = vmul.f32 %v1295, %v535
    %v2024 = vmul.f32 %v1295, %v540
    %v2025 = vadd.f32 %v2011, %v2018
    %v2026 = vadd.f32 %v2012, %v2019
    %v2027 = vadd.f32 %v2013, %v2020
    %v2028 = vadd.f32 %v2014, %v2021
    %v2029 = vadd.f32 %v2015, %v2022
    %v2030 = vadd.f32 %v2016, %v2023
    %v2031 = vadd.f32 %v2017, %v2024
    %v2032 = vmul.f32 %v1345, %v545
    %v2033 = vmul.f32 %v1345, %v550
    %v2034 = vmul.f32 %v1345, %v555
    %v2035 = vmul.f32 %v1345, %v560
    %v2036 = vmul.f32 %v1345, %v565
    %v2037 = vmul.f32 %v1345, %v570
    %v2038 = vmul.f32 %v1345, %v575
    %v2039 = vadd.f32 %v2025, %v2032
    %v2040 = vadd.f32 %v2026, %v2033
    %v2041 = vadd.f32 %v2027, %v2034
    %v2042 = vadd.f32 %v2028, %v2035
    %v2043 = vadd.f32 %v2029, %v2036
    %v2044 = vadd.f32 %v2030, %v2037
    %v2045 = vadd.f32 %v2031, %v2038
    %v2046 = vadd.f32 %v923, %v1787
    %v2047 = vadd.f32 %v928, %v1788
    %v2048 = vadd.f32 %v933, %v1789
    %v2049 = vadd.f32 %v938, %v1790
    %v2050 = vadd.f32 %v943, %v1791
    %v2051 = vadd.f32 %v948, %v1792
    %v2052 = vadd.f32 %v953, %v1793
    %v2053 = vadd.f32 %v958, %v1850
    %v2054 = vadd.f32 %v963, %v1851
    %v2055 = vadd.f32 %v968, %v1852
    %v2056 = vadd.f32 %v973, %v1853
    %v2057 = vadd.f32 %v978, %v1854
    %v2058 = vadd.f32 %v983, %v1855
    %v2059 = vadd.f32 %v988, %v1856
    %v2060 = vadd.f32 %v993, %v1913
    %v2061 = vadd.f32 %v998, %v1914
    %v2062 = vadd.f32 %v1003, %v1915
    %v2063 = vadd.f32 %v1008, %v1916
    %v2064 = vadd.f32 %v1013, %v1917
    %v2065 = vadd.f32 %v1018, %v1918
    %v2066 = vadd.f32 %v1023, %v1919
    %v2067 = vadd.f32 %v1028, %v1976
    %v2068 = vadd.f32 %v1033, %v1977
    %v2069 = vadd.f32 %v1038, %v1978
    %v2070 = vadd.f32 %v1043, %v1979
    %v2071 = vadd.f32 %v1048, %v1980
    %v2072 = vadd.f32 %v1053, %v1981
    %v2073 = vadd.f32 %v1058, %v1982
    %v2074 = vadd.f32 %v1063, %v2039
    %v2075 = vadd.f32 %v1068, %v2040
    %v2076 = vadd.f32 %v1073, %v2041
    %v2077 = vadd.f32 %v1078, %v2042
    %v2078 = vadd.f32 %v1083, %v2043
    %v2079 = vadd.f32 %v1088, %v2044
    %v2080 = vadd.f32 %v1093, %v2045
    %v2081 = vmax.f32 %v2046, 0.0
    %v2082 = vmax.f32 %v2047, 0.0
    %v2083 = vmax.f32 %v2048, 0.0
    %v2084 = vmax.f32 %v2049, 0.0
    %v2085 = vmax.f32 %v2050, 0.0
    %v2086 = vmax.f32 %v2051, 0.0
    %v2087 = vmax.f32 %v2052, 0.0
    %v2088 = vmax.f32 %v2053, 0.0
    %v2089 = vmax.f32 %v2054, 0.0
    %v2090 = vmax.f32 %v2055, 0.0
    %v2091 = vmax.f32 %v2056, 0.0
    %v2092 = vmax.f32 %v2057, 0.0
    %v2093 = vmax.f32 %v2058, 0.0
    %v2094 = vmax.f32 %v2059, 0.0
    %v2095 = vmax.f32 %v2060, 0.0
    %v2096 = vmax.f32 %v2061, 0.0
    %v2097 = vmax.f32 %v2062, 0.0
    %v2098 = vmax.f32 %v2063, 0.0
    %v2099 = vmax.f32 %v2064, 0.0
    %v2100 = vmax.f32 %v2065, 0.0
    %v2101 = vmax.f32 %v2066, 0.0
    %v2102 = vmax.f32 %v2067, 0.0
    %v2103 = vmax.f32 %v2068, 0.0
    %v2104 = vmax.f32 %v2069, 0.0
    %v2105 = vmax.f32 %v2070, 0.0
    %v2106 = vmax.f32 %v2071, 0.0
    %v2107 = vmax.f32 %v2072, 0.0
    %v2108 = vmax.f32 %v2073, 0.0
    %v2109 = vmax.f32 %v2074, 0.0
    %v2110 = vmax.f32 %v2075, 0.0
    %v2111 = vmax.f32 %v2076, 0.0
    %v2112 = vmax.f32 %v2077, 0.0
    %v2113 = vmax.f32 %v2078, 0.0
    %v2114 = vmax.f32 %v2079, 0.0
    %v2115 = vmax.f32 %v2080, 0.0
    %v2116 = vld [vmem:[%s4] sm:$0x1f]
    %v2117 = vld [vmem:[%s4 + $0x8] sm:$0x1f]
    %v2118 = vld [vmem:[%s4 + $0x10] sm:$0x1f]
    %vm2119 = vcmask 195584
    %v2121 = vsel %vm2119, %v2118, 0
    %2123 = vmatprep.subr.mxu0 0.0
    %2124 = vmatpush1.msra.mxu0 %v1696
    %2125 = vmatprep.subr.mxu0 0.0
    %2126 = vmatpush1.msra.mxu0 %v1697
    %2127 = vmatprep.subr.mxu0 0.0
    %2128 = vmatpush1.msra.mxu0 %v1698
    %2129 = vmatprep.subr.mxu0 0.0
    %2130 = vmatpush1.msra.mxu0 %v1699
    %2131 = vmatprep.subr.mxu0 0.0
    %2132 = vmatpush1.msra.mxu0 %v1700
    %2133 = vmatprep.subr.mxu0 0.0
    %2134 = vmatpush1.msra.mxu0 %v1701
    %2135 = vmatprep.subr.mxu0 0.0
    %2136 = vmatpush1.msra.mxu0 %v1702
    %2137 = vmatprep.subr.mxu0 0.0
    %2138 = vmatpush1.msra.mxu0 %v1703
    %2139 = vmatprep.subr.mxu0 0.0
    %2140 = vmatpush1.msra.mxu0 %v1704
    %2141 = vmatprep.subr.mxu0 0.0
    %2142 = vmatpush1.msra.mxu0 %v1705
    %2143 = vmatprep.subr.mxu0 0.0
    %2144 = vmatpush1.msra.mxu0 %v1706
    %2145 = vmatprep.subr.mxu0 0.0
    %2146 = vmatpush1.msra.mxu0 %v1707
    %2147 = vmatprep.subr.mxu0 0.0
    %2148 = vmatpush1.msra.mxu0 %v1708
    %2149 = vmatprep.subr.mxu0 0.0
    %2150 = vmatpush1.msra.mxu0 %v1709
    %2151 = vmatprep.subr.mxu0 0.0
    %2152 = vmatpush1.msra.mxu0 %v1710
    %2153 = vmatprep.subr.mxu0 0.0
    %2154 = vmatpush1.msra.mxu0 %v1711
    %2155 = vmatprep.subr.mxu0 0.0
    %2156 = vmatpush1.msra.mxu0 %v1712
    %2157 = vmatprep.subr.mxu0 0.0
    %2158 = vmatpush1.msra.mxu0 %v1713
    %2159 = vmatprep.subr.mxu0 0.0
    %2160 = vmatpush1.msra.mxu0 %v1714
    %2161 = vmatprep.subr.mxu0 0.0
    %2162 = vmatpush1.msra.mxu0 %v1715
    %2163 = vmatprep.subr.mxu0 0.0
    %2164 = vmatpush1.msra.mxu0 %v1716
    %2165 = vmatprep.subr.mxu0 0.0
    %2166 = vmatpush1.msra.mxu0 %v1717
    %2167 = vmatprep.subr.mxu0 0.0
    %2168 = vmatpush1.msra.mxu0 %v1718
    %2169 = vmatprep.subr.mxu0 0.0
    %2170 = vmatpush1.msra.mxu0 %v1719
    %2171 = vmatprep.subr.mxu0 0.0
    %2172 = vmatpush1.msra.mxu0 %v1720
    %2173 = vmatprep.subr.mxu0 0.0
    %2174 = vmatpush1.msra.mxu0 %v1721
    %2175 = vmatprep.subr.mxu0 0.0
    %2176 = vmatpush1.msra.mxu0 %v1722
    %2177 = vmatprep.subr.mxu0 0.0
    %2178 = vmatpush1.msra.mxu0 %v1723
    %2179 = vmatprep.subr.mxu0 0.0
    %2180 = vmatpush1.msra.mxu0 %v1724
    %2181 = vmatprep.subr.mxu0 0.0
    %2182 = vmatpush1.msra.mxu0 %v1725
    %2183 = vmatprep.subr.mxu0 0.0
    %2184 = vmatpush1.msra.mxu0 %v1726
    %2185 = vmatprep.subr.mxu0 0.0
    %2186 = vmatpush1.msra.mxu0 %v1727
    %2187 = vmatprep.mubr.f32.mxu0 %v2117
    %2188 = vmatmul.mubr.f32.gmra.mrb[0].mxu0 %v2116
    %v2189 = vpop.f32.mrb[0].mxu0
    %v2190 = vadd.f32 0.0, %v2189
    %v2191 = vpop.f32.mrb[0].mxu0
    %2192 = vdwg.mxu0
    %2193 = vmatprep.subr.mxu0 0.0
    %2194 = vmatpush1.msra.mxu0 %v1728
    %2195 = vmatprep.subr.mxu0 0.0
    %2196 = vmatpush1.msra.mxu0 %v1729
    %2197 = vmatprep.subr.mxu0 0.0
    %2198 = vmatpush1.msra.mxu0 %v1730
    %2199 = vmatprep.subr.mxu0 0.0
    %2200 = vmatpush1.msra.mxu0 0.0
    %2201 = vmatprep.subr.mxu0 0.0
    %2202 = vmatpush1.msra.mxu0 0.0
    %2203 = vmatprep.subr.mxu0 0.0
    %2204 = vmatpush1.msra.mxu0 0.0
    %2205 = vmatprep.subr.mxu0 0.0
    %2206 = vmatpush1.msra.mxu0 0.0
    %2207 = vmatprep.subr.mxu0 0.0
    %2208 = vmatpush1.msra.mxu0 0.0
    %2209 = vmatprep.subr.mxu0 0.0
    %2210 = vmatpush1.msra.mxu0 0.0
    %2211 = vmatprep.subr.mxu0 0.0
    %2212 = vmatpush1.msra.mxu0 0.0
    %2213 = vmatprep.subr.mxu0 0.0
    %2214 = vmatpush1.msra.mxu0 0.0
    %2215 = vmatprep.subr.mxu0 0.0
    %2216 = vmatpush1.msra.mxu0 0.0
    %2217 = vmatprep.subr.mxu0 0.0
    %2218 = vmatpush1.msra.mxu0 0.0
    %2219 = vmatprep.subr.mxu0 0.0
    %2220 = vmatpush1.msra.mxu0 0.0
    %2221 = vmatprep.subr.mxu0 0.0
    %2222 = vmatpush1.msra.mxu0 0.0
    %2223 = vmatprep.subr.mxu0 0.0
    %2224 = vmatpush1.msra.mxu0 0.0
    %2225 = vmatprep.subr.mxu0 0.0
    %2226 = vmatpush1.msra.mxu0 0.0
    %2227 = vmatprep.subr.mxu0 0.0
    %2228 = vmatpush1.msra.mxu0 0.0
    %2229 = vmatprep.subr.mxu0 0.0
    %2230 = vmatpush1.msra.mxu0 0.0
    %2231 = vmatprep.subr.mxu0 0.0
    %2232 = vmatpush1.msra.mxu0 0.0
    %2233 = vmatprep.subr.mxu0 0.0
    %2234 = vmatpush1.msra.mxu0 0.0
    %2235 = vmatprep.subr.mxu0 0.0
    %2236 = vmatpush1.msra.mxu0 0.0
    %2237 = vmatprep.subr.mxu0 0.0
    %2238 = vmatpush1.msra.mxu0 0.0
    %2239 = vmatprep.subr.mxu0 0.0
    %2240 = vmatpush1.msra.mxu0 0.0
    %2241 = vmatprep.subr.mxu0 0.0
    %2242 = vmatpush1.msra.mxu0 0.0
    %2243 = vmatprep.subr.mxu0 0.0
    %2244 = vmatpush1.msra.mxu0 0.0
    %2245 = vmatprep.subr.mxu0 0.0
    %2246 = vmatpush1.msra.mxu0 0.0
    %2247 = vmatprep.subr.mxu0 0.0
    %2248 = vmatpush1.msra.mxu0 0.0
    %2249 = vmatprep.subr.mxu0 0.0
    %2250 = vmatpush1.msra.mxu0 0.0
    %2251 = vmatprep.subr.mxu0 0.0
    %2252 = vmatpush1.msra.mxu0 0.0
    %2253 = vmatprep.subr.mxu0 0.0
    %2254 = vmatpush1.msra.mxu0 0.0
    %2255 = vmatprep.subr.mxu0 0.0
    %2256 = vmatpush1.msra.mxu0 0.0
    %2257 = vmatprep.mubr.f32.mxu0 0.0
    %2258 = vmatmul.mubr.f32.gmra.mrb[0].mxu0 %v2121
    %v2259 = vpop.f32.mrb[0].mxu0
    %v2260 = vadd.f32 %v2190, %v2259
    %v2261 = vpop.f32.mrb[0].mxu0
    %2262 = vdwg.mxu0
    %v2263 = vld [vmem:[%s5] sm:$0x1f]
    %v2264 = vld [vmem:[%s5 + $0x8] sm:$0x1f]
    %v2265 = vld [vmem:[%s5 + $0x10] sm:$0x1f]
    %v2267 = vsel %vm2119, %v2265, 0
    %2269 = vmatprep.subr.mxu0 0.0
    %2270 = vmatpush1.msra.mxu0 %v2081
    %2271 = vmatprep.subr.mxu0 0.0
    %2272 = vmatpush1.msra.mxu0 %v2082
    %2273 = vmatprep.subr.mxu0 0.0
    %2274 = vmatpush1.msra.mxu0 %v2083
    %2275 = vmatprep.subr.mxu0 0.0
    %2276 = vmatpush1.msra.mxu0 %v2084
    %2277 = vmatprep.subr.mxu0 0.0
    %2278 = vmatpush1.msra.mxu0 %v2085
    %2279 = vmatprep.subr.mxu0 0.0
    %2280 = vmatpush1.msra.mxu0 %v2086
    %2281 = vmatprep.subr.mxu0 0.0
    %2282 = vmatpush1.msra.mxu0 %v2087
    %2283 = vmatprep.subr.mxu0 0.0
    %2284 = vmatpush1.msra.mxu0 %v2088
    %2285 = vmatprep.subr.mxu0 0.0
    %2286 = vmatpush1.msra.mxu0 %v2089
    %2287 = vmatprep.subr.mxu0 0.0
    %2288 = vmatpush1.msra.mxu0 %v2090
    %2289 = vmatprep.subr.mxu0 0.0
    %2290 = vmatpush1.msra.mxu0 %v2091
    %2291 = vmatprep.subr.mxu0 0.0
    %2292 = vmatpush1.msra.mxu0 %v2092
    %2293 = vmatprep.subr.mxu0 0.0
    %2294 = vmatpush1.msra.mxu0 %v2093
    %2295 = vmatprep.subr.mxu0 0.0
    %2296 = vmatpush1.msra.mxu0 %v2094
    %2297 = vmatprep.subr.mxu0 0.0
    %2298 = vmatpush1.msra.mxu0 %v2095
    %2299 = vmatprep.subr.mxu0 0.0
    %2300 = vmatpush1.msra.mxu0 %v2096
    %2301 = vmatprep.subr.mxu0 0.0
    %2302 = vmatpush1.msra.mxu0 %v2097
    %2303 = vmatprep.subr.mxu0 0.0
    %2304 = vmatpush1.msra.mxu0 %v2098
    %2305 = vmatprep.subr.mxu0 0.0
    %2306 = vmatpush1.msra.mxu0 %v2099
    %2307 = vmatprep.subr.mxu0 0.0
    %2308 = vmatpush1.msra.mxu0 %v2100
    %2309 = vmatprep.subr.mxu0 0.0
    %2310 = vmatpush1.msra.mxu0 %v2101
    %2311 = vmatprep.subr.mxu0 0.0
    %2312 = vmatpush1.msra.mxu0 %v2102
    %2313 = vmatprep.subr.mxu0 0.0
    %2314 = vmatpush1.msra.mxu0 %v2103
    %2315 = vmatprep.subr.mxu0 0.0
    %2316 = vmatpush1.msra.mxu0 %v2104
    %2317 = vmatprep.subr.mxu0 0.0
    %2318 = vmatpush1.msra.mxu0 %v2105
    %2319 = vmatprep.subr.mxu0 0.0
    %2320 = vmatpush1.msra.mxu0 %v2106
    %2321 = vmatprep.subr.mxu0 0.0
    %2322 = vmatpush1.msra.mxu0 %v2107
    %2323 = vmatprep.subr.mxu0 0.0
    %2324 = vmatpush1.msra.mxu0 %v2108
    %2325 = vmatprep.subr.mxu0 0.0
    %2326 = vmatpush1.msra.mxu0 %v2109
    %2327 = vmatprep.subr.mxu0 0.0
    %2328 = vmatpush1.msra.mxu0 %v2110
    %2329 = vmatprep.subr.mxu0 0.0
    %2330 = vmatpush1.msra.mxu0 %v2111
    %2331 = vmatprep.subr.mxu0 0.0
    %2332 = vmatpush1.msra.mxu0 %v2112
    %2333 = vmatprep.mubr.f32.mxu0 %v2264
    %2334 = vmatmul.mubr.f32.gmra.mrb[0].mxu0 %v2263
    %v2335 = vpop.f32.mrb[0].mxu0
    %v2336 = vadd.f32 0.0, %v2335
    %v2337 = vpop.f32.mrb[0].mxu0
    %2338 = vdwg.mxu0
    %2339 = vmatprep.subr.mxu0 0.0
    %2340 = vmatpush1.msra.mxu0 %v2113
    %2341 = vmatprep.subr.mxu0 0.0
    %2342 = vmatpush1.msra.mxu0 %v2114
    %2343 = vmatprep.subr.mxu0 0.0
    %2344 = vmatpush1.msra.mxu0 %v2115
    %2345 = vmatprep.subr.mxu0 0.0
    %2346 = vmatpush1.msra.mxu0 0.0
    %2347 = vmatprep.subr.mxu0 0.0
    %2348 = vmatpush1.msra.mxu0 0.0
    %2349 = vmatprep.subr.mxu0 0.0
    %2350 = vmatpush1.msra.mxu0 0.0
    %2351 = vmatprep.subr.mxu0 0.0
    %2352 = vmatpush1.msra.mxu0 0.0
    %2353 = vmatprep.subr.mxu0 0.0
    %2354 = vmatpush1.msra.mxu0 0.0
    %2355 = vmatprep.subr.mxu0 0.0
    %2356 = vmatpush1.msra.mxu0 0.0
    %2357 = vmatprep.subr.mxu0 0.0
    %2358 = vmatpush1.msra.mxu0 0.0
    %2359 = vmatprep.subr.mxu0 0.0
    %2360 = vmatpush1.msra.mxu0 0.0
    %2361 = vmatprep.subr.mxu0 0.0
    %2362 = vmatpush1.msra.mxu0 0.0
    %2363 = vmatprep.subr.mxu0 0.0
    %2364 = vmatpush1.msra.mxu0 0.0
    %2365 = vmatprep.subr.mxu0 0.0
    %2366 = vmatpush1.msra.mxu0 0.0
    %2367 = vmatprep.subr.mxu0 0.0
    %2368 = vmatpush1.msra.mxu0 0.0
    %2369 = vmatprep.subr.mxu0 0.0
    %2370 = vmatpush1.msra.mxu0 0.0
    %2371 = vmatprep.subr.mxu0 0.0
    %2372 = vmatpush1.msra.mxu0 0.0
    %2373 = vmatprep.subr.mxu0 0.0
    %2374 = vmatpush1.msra.mxu0 0.0
    %2375 = vmatprep.subr.mxu0 0.0
    %2376 = vmatpush1.msra.mxu0 0.0
    %2377 = vmatprep.subr.mxu0 0.0
    %2378 = vmatpush1.msra.mxu0 0.0
    %2379 = vmatprep.subr.mxu0 0.0
    %2380 = vmatpush1.msra.mxu0 0.0
    %2381 = vmatprep.subr.mxu0 0.0
    %2382 = vmatpush1.msra.mxu0 0.0
    %2383 = vmatprep.subr.mxu0 0.0
    %2384 = vmatpush1.msra.mxu0 0.0
    %2385 = vmatprep.subr.mxu0 0.0
    %2386 = vmatpush1.msra.mxu0 0.0
    %2387 = vmatprep.subr.mxu0 0.0
    %2388 = vmatpush1.msra.mxu0 0.0
    %2389 = vmatprep.subr.mxu0 0.0
    %2390 = vmatpush1.msra.mxu0 0.0
    %2391 = vmatprep.subr.mxu0 0.0
    %2392 = vmatpush1.msra.mxu0 0.0
    %2393 = vmatprep.subr.mxu0 0.0
    %2394 = vmatpush1.msra.mxu0 0.0
    %2395 = vmatprep.subr.mxu0 0.0
    %2396 = vmatpush1.msra.mxu0 0.0
    %2397 = vmatprep.subr.mxu0 0.0
    %2398 = vmatpush1.msra.mxu0 0.0
    %2399 = vmatprep.subr.mxu0 0.0
    %2400 = vmatpush1.msra.mxu0 0.0
    %2401 = vmatprep.subr.mxu0 0.0
    %2402 = vmatpush1.msra.mxu0 0.0
    %2403 = vmatprep.mubr.f32.mxu0 0.0
    %2404 = vmatmul.mubr.f32.gmra.mrb[0].mxu0 %v2267
    %v2405 = vpop.f32.mrb[0].mxu0
    %v2406 = vadd.f32 %v2336, %v2405
    %v2407 = vpop.f32.mrb[0].mxu0
    %2408 = vdwg.mxu0
    %vm2409 = vcmask 1044480
    %v2410 = vsel %vm2409, %v2260, -inf
    %v2411 = vrot.slane %v2410, 4
    %v2412 = vmax.f32 %v2410, %v2411
    %v2413 = vrot.slane %v2412, 2
    %v2414 = vmax.f32 %v2412, %v2413
    %v2415 = vrot.slane %v2414, 1
    %v2416 = vmax.f32 %v2414, %v2415
    %v2417 = vsub.f32 %v2260, %v2416
    %v2418 = vmul.f32 %v2417, 1.442695
    %v2419 = vpow.pop %v2418
    %v2420 = vsel %vm2409, %v2419, 0.0
    %v2421 = vrot.slane %v2420, 4
    %v2422 = vadd.f32 %v2420, %v2421
    %v2423 = vrot.slane %v2422, 2
    %v2424 = vadd.f32 %v2422, %v2423
    %v2425 = vrot.slane %v2424, 1
    %v2426 = vadd.f32 %v2424, %v2425
    %v2427 = vrcp.pop %v2426
    %v2428 = vmul.f32 %v2426, %v2427
    %v2429 = vsub.f32 2.0, %v2428
    %v2430 = vmul.f32 %v2427, %v2429
    %v2431 = vmul.f32 %v2419, %v2430
    %2432 = vst [vmem:[#allocation2] sm:$0x1f] %v2431
    %v2433 = vsel %vm2409, %v2406, -inf
    %v2434 = vrot.slane %v2433, 4
    %v2435 = vmax.f32 %v2433, %v2434
    %v2436 = vrot.slane %v2435, 2
    %v2437 = vmax.f32 %v2435, %v2436
    %v2438 = vrot.slane %v2437, 1
    %v2439 = vmax.f32 %v2437, %v2438
    %v2440 = vsub.f32 %v2406, %v2439
    %v2441 = vmul.f32 %v2440, 1.442695
    %v2442 = vpow.pop %v2441
    %v2443 = vsel %vm2409, %v2442, 0.0
    %v2444 = vrot.slane %v2443, 4
    %v2445 = vadd.f32 %v2443, %v2444
    %v2446 = vrot.slane %v2445, 2
    %v2447 = vadd.f32 %v2445, %v2446
    %v2448 = vrot.slane %v2447, 1
    %v2449 = vadd.f32 %v2447, %v2448
    %v2450 = vrcp.pop %v2449
    %v2451 = vmul.f32 %v2449, %v2450
    %v2452 = vsub.f32 2.0, %v2451
    %v2453 = vmul.f32 %v2450, %v2452
    %v2454 = vmul.f32 %v2442, %v2453
    %2455 = vst [vmem:[#allocation4] sm:$0x1f] %v2454
    // Predicated region
    $region26: #{tpu_custom_call.1} parent=1 // pred_check
      _
    $region27: #{tpu_custom_call.1} parent=1 // pred_check_branch
      %2457 = sbr.rel (0) target = $region29
    $region28: #{tpu_custom_call.1} parent=1 // pred_region
      %s2459 = ssub.s32 128, 128
      %2460 = vsyncadd [#allocation3], %s2459
      %s2462 = sshll.u32 [#allocation2], 4
      %s2463 = int_to_ptr.vmem [resolvable:$true] %s2462
      %2465 = dma.vmem_to_hbm [thread:$0]  %s2463, 128, %s6, [#allocation3]
    $region29: #{tpu_custom_call.1} parent=1 // pred_fallthru
      _
    // Predicated region
    $region30: #{tpu_custom_call.1} parent=1 // pred_check
      _
    $region31: #{tpu_custom_call.1} parent=1 // pred_check_branch
      %2467 = sbr.rel (0) target = $region33
    $region32: #{tpu_custom_call.1} parent=1 // pred_region
      %s2469 = ssub.s32 128, 128
      %2470 = vsyncadd [#allocation5], %s2469
      %s2472 = sshll.u32 [#allocation4], 4
      %s2473 = int_to_ptr.vmem [resolvable:$true] %s2472
      %2475 = dma.vmem_to_hbm [thread:$0]  %s2473, 128, %s7, [#allocation5]
    $region33: #{tpu_custom_call.1} parent=1 // pred_fallthru
      _
    // Predicated region
    $region34: #{tpu_custom_call.1} parent=1 // pred_check
      _
    $region35: #{tpu_custom_call.1} parent=1 // pred_check_branch
      %2477 = sbr.rel (0) target = $region37
    $region36: #{tpu_custom_call.1} parent=1 // pred_region
      %2478 = dma.done [#allocation3], 128
    $region37: #{tpu_custom_call.1} parent=1 // pred_fallthru
      _
    // Predicated region
    $region38: #{tpu_custom_call.1} parent=1 // pred_check
      _
    $region39: #{tpu_custom_call.1} parent=1 // pred_check_branch
      %2480 = sbr.rel (0) target = $region41
    $region40: #{tpu_custom_call.1} parent=1 // pred_region
      %2481 = dma.done [#allocation5], 128
    $region41: #{tpu_custom_call.1} parent=1 // pred_fallthru
      _
    %2482 = vsyncpa [#allocation3], 1
    %2483 = vsyncpa [#allocation5], 1

</llo_original>
